<compile_context>
chip_gen: v5e
topology: v5e:2x2
jax: 0.10.0
libtpu: 0.0.40
codegen_flags: <defaults>
</compile_context>

<pallas_src>
import functools

import jax
import jax.numpy as jnp
from jax.experimental import pallas as pl
from jax.experimental.pallas import tpu as pltpu


NH1 = 128          # first-layer width per branch
NH2 = 256          # second-layer width per branch (fused hidden)
KIN = 16           # padded fused input features (8 state + 4 action + 4 zero)


# ----------------------------------------------------------------------------
# Kernel: whole MLP for one batch tile (feature-major layout, batch in lanes)
# ----------------------------------------------------------------------------
def qnet_kernel(
    sa_ref,                       # (16, tb)   [state|action|0] transposed
    w1_ref, b1_ref,               # (256, 16), (256, 1)  fused first layer
    w2s_ref, b2s_ref,             # (256, 128), (256, 1) state branch layer 2
    w2a_ref, b2a_ref,             # (256, 128), (256, 1) action branch layer 2
    w3_ref, b3_ref,               # (128, 256), (128, 1) head layer 1
    w4_ref, b4_ref,               # (128, 1),  (1, 1)    head layer 2 (as column)
    out_ref,                      # (1, tb)
):
    f32 = jnp.float32

    # Fused first layers of both branches: one MXU push.
    #   rows [0:128)   = state  branch Linear(8,128)
    #   rows [128:256) = action branch Linear(4,128)
    h1 = jnp.dot(w1_ref[...], sa_ref[...], preferred_element_type=f32) + b1_ref[...]
    h1 = jnp.maximum(h1, 0.0)                                   # (256, tb)

    # Second layer of each branch, then sum (this is the module's `+`).
    hs = jnp.dot(w2s_ref[...], h1[:NH1, :], preferred_element_type=f32) + b2s_ref[...]
    hs = jnp.maximum(hs, 0.0)                                   # (256, tb)
    ha = jnp.dot(w2a_ref[...], h1[NH1:, :], preferred_element_type=f32) + b2a_ref[...]
    ha = jnp.maximum(ha, 0.0)                                   # (256, tb)
    h = hs + ha                                                 # (256, tb)

    # Head: Linear(256,128) + ReLU.
    h = jnp.dot(w3_ref[...], h, preferred_element_type=f32) + b3_ref[...]
    h = jnp.maximum(h, 0.0)                                     # (128, tb)

    # Head: Linear(128,1) as VPU multiply + sublane reduction (MXU stays free).
    out = jnp.sum(h * w4_ref[...], axis=0, keepdims=True) + b4_ref[...]   # (1, tb)

    out_ref[...] = out.astype(out_ref.dtype)


# ----------------------------------------------------------------------------
# Wrapper
# ----------------------------------------------------------------------------
def _full_spec(shape):
    """Whole-array block, constant across the batch-tile grid axis (DMA'd once)."""
    zeros = (0,) * len(shape)
    return pl.BlockSpec(shape, lambda i, _z=zeros: _z)


@functools.partial(jax.jit, static_argnames=("tb_max",))
def qnet_forward(state, action, params, tb_max=512):
    """Q_Net forward: state (B,8), action (B,4) -> (B,1) float32."""
    (w1s, b1s, w2s, b2s, w1a, b1a, w2a, b2a, w3, b3, w4, b4) = params
    B = state.shape[0]

    # ---- choose a lane-aligned batch tile (multiple of 128) ----------------
    Bp = ((B + 127) // 128) * 128
    tb = min(tb_max, Bp)
    # Prefer >= 2 grid steps so both v7x TensorCores get work.
    if Bp == tb and Bp >= 256 and (Bp // 2) % 128 == 0:
        tb = Bp // 2
    Bp = ((Bp + tb - 1) // tb) * tb
    grid = (Bp // tb,)

    # ---- feature-major input: batch in the lane dimension ------------------
    sa = jnp.concatenate(
        [state.astype(jnp.float32), action.astype(jnp.float32)], axis=1)   # (B, 12)
    sa_t = jnp.pad(sa.T, ((0, KIN - 12), (0, Bp - B)))                     # (16, Bp)

    # ---- fused first-layer weight (block-diagonal) & packed biases ---------
    w1 = jnp.zeros((NH2, KIN), jnp.float32)
    w1 = w1.at[:NH1, :8].set(w1s.astype(jnp.float32))        # state  Linear(8,128)
    w1 = w1.at[NH1:, 8:12].set(w1a.astype(jnp.float32))      # action Linear(4,128)
    b1 = jnp.concatenate([b1s, b1a]).astype(jnp.float32).reshape(NH2, 1)

    w2s_c = w2s.astype(jnp.float32)                          # (256, 128)
    w2a_c = w2a.astype(jnp.float32)                          # (256, 128)
    w3_c = w3.astype(jnp.float32)                            # (128, 256)
    b2s_c = b2s.astype(jnp.float32).reshape(NH2, 1)
    b2a_c = b2a.astype(jnp.float32).reshape(NH2, 1)
    b3_c = b3.astype(jnp.float32).reshape(NH1, 1)
    w4_c = w4.astype(jnp.float32).reshape(NH1, 1)            # column vector
    b4_c = b4.astype(jnp.float32).reshape(1, 1)

    weight_bytes = 4 * (w1.size + b1.size + w2s_c.size + b2s_c.size
                        + w2a_c.size + b2a_c.size + w3_c.size + b3_c.size
                        + w4_c.size + b4_c.size)
    flops = 2 * Bp * (KIN * NH2 + NH1 * NH2 * 2 + NH2 * NH1 + NH1)

    out_t = pl.pallas_call(
        qnet_kernel,
        out_shape=jax.ShapeDtypeStruct((1, Bp), jnp.float32),
        grid_spec=pltpu.PrefetchScalarGridSpec(
            num_scalar_prefetch=0,
            grid=grid,
            in_specs=[
                pl.BlockSpec((KIN, tb), lambda i: (0, i)),   # input tile (lane-dense)
                _full_spec(w1.shape), _full_spec(b1.shape),
                _full_spec(w2s_c.shape), _full_spec(b2s_c.shape),
                _full_spec(w2a_c.shape), _full_spec(b2a_c.shape),
                _full_spec(w3_c.shape), _full_spec(b3_c.shape),
                _full_spec(w4_c.shape), _full_spec(b4_c.shape),
            ],
            out_specs=pl.BlockSpec((1, tb), lambda i: (0, i)),  # lane-dense output
        ),
        compiler_params=pltpu.CompilerParams(
            dimension_semantics=("parallel",),
        ),
        cost_estimate=pl.CostEstimate(
            flops=flops,
            transcendentals=0,
            bytes_accessed=4 * (sa_t.size + Bp) + weight_bytes,
        ),
    )(sa_t, w1, b1, w2s_c, b2s_c, w2a_c, b2a_c, w3_c, b3_c, w4_c, b4_c)

    return out_t[0, :B].reshape(B, 1)


# ----------------------------------------------------------------------------
# Deterministic parameter init (PyTorch layout: W is (out, in), b is (out,))
# ----------------------------------------------------------------------------
def init_params(key):
    def linear(key, fan_in, fan_out):
        kw, kb = jax.random.split(key)
        bound = 1.0 / float(jnp.sqrt(jnp.float32(fan_in)))
        w = jax.random.uniform(kw, (fan_out, fan_in), jnp.float32, -bound, bound)
        b = jax.random.uniform(kb, (fan_out,), jnp.float32, -bound, bound)
        return w, b

    keys = jax.random.split(key, 6)
    w1s, b1s = linear(keys[0], 8, 128)
    w2s, b2s = linear(keys[1], 128, 256)
    w1a, b1a = linear(keys[2], 4, 128)
    w2a, b2a = linear(keys[3], 128, 256)
    w3, b3 = linear(keys[4], 256, 128)
    w4, b4 = linear(keys[5], 128, 1)
    return (w1s, b1s, w2s, b2s, w1a, b1a, w2a, b2a, w3, b3, w4, b4)


# Pure-JAX reference (PyTorch semantics: y = x @ W.T + b).
def qnet_reference(state, action, params):
    (w1s, b1s, w2s, b2s, w1a, b1a, w2a, b2a, w3, b3, w4, b4) = params
    hs = jax.nn.relu(state @ w1s.T + b1s)
    hs = jax.nn.relu(hs @ w2s.T + b2s)
    ha = jax.nn.relu(action @ w1a.T + b1a)
    ha = jax.nn.relu(ha @ w2a.T + b2a)
    h = hs + ha
    h = jax.nn.relu(h @ w3.T + b3)
    return h @ w4.T + b4


if __name__ == "__main__":
    key = jax.random.PRNGKey(0)
    k_params, k_state, k_action, k_state2, k_action2 = jax.random.split(key, 5)

    params = init_params(k_params)

    # Small test (batch=2): single 128-wide tile, padded tail columns.
    B = 2
    state = jax.random.normal(k_state, (B, 8), jnp.float32)
    action = jax.random.normal(k_action, (B, 4), jnp.float32)
    out = qnet_forward(state, action, params)
    jax.block_until_ready(out)
    ref = qnet_reference(state, action, params)
    assert out.shape == (B, 1)
    assert jnp.allclose(out, ref, atol=1e-3, rtol=1e-3)

    # Larger test: exercises grid > 1 (both v7x TensorCores) and tail padding.
    B2 = 1000
    state2 = jax.random.normal(k_state2, (B2, 8), jnp.float32)
    action2 = jax.random.normal(k_action2, (B2, 4), jnp.float32)
    out2 = qnet_forward(state2, action2, params)
    jax.block_until_ready(out2)
    ref2 = qnet_reference(state2, action2, params)
    assert out2.shape == (B2, 1)
    assert jnp.allclose(out2, ref2, atol=1e-3, rtol=1e-3)

    print("KERNEL_OK")
</pallas_src>

<mosaic_0001>
module attributes {stable_mosaic.version = 11 : i64} {
  func.func @qnet_kernel(%arg0: i32, %arg1: memref<16x128xf32, #tpu.memory_space<vmem>>, %arg2: memref<256x16xf32, #tpu.memory_space<vmem>>, %arg3: memref<256x1xf32, #tpu.memory_space<vmem>>, %arg4: memref<256x128xf32, #tpu.memory_space<vmem>>, %arg5: memref<256x1xf32, #tpu.memory_space<vmem>>, %arg6: memref<256x128xf32, #tpu.memory_space<vmem>>, %arg7: memref<256x1xf32, #tpu.memory_space<vmem>>, %arg8: memref<128x256xf32, #tpu.memory_space<vmem>>, %arg9: memref<128x1xf32, #tpu.memory_space<vmem>>, %arg10: memref<128x1xf32, #tpu.memory_space<vmem>>, %arg11: memref<1x1xf32, #tpu.memory_space<vmem>>, %arg12: memref<1x128xf32, #tpu.memory_space<vmem>>) attributes {dimension_semantics = [#tpu.dimension_semantics<parallel>], iteration_bounds = array<i64: 1>, scalar_prefetch = 0 : i64, scratch_operands = 0 : i64, tpu.core_type = #tpu.core_type<tc>, window_params = [{transform_indices = @transform_0, window_bounds = array<i64: 16, 128>}, {pipeline_mode = #tpu.pipeline_mode<synchronous>, transform_indices = @transform_1, window_bounds = array<i64: 256, 16>}, {pipeline_mode = #tpu.pipeline_mode<synchronous>, transform_indices = @transform_2, window_bounds = array<i64: 256, 1>}, {pipeline_mode = #tpu.pipeline_mode<synchronous>, transform_indices = @transform_3, window_bounds = array<i64: 256, 128>}, {pipeline_mode = #tpu.pipeline_mode<synchronous>, transform_indices = @transform_4, window_bounds = array<i64: 256, 1>}, {pipeline_mode = #tpu.pipeline_mode<synchronous>, transform_indices = @transform_5, window_bounds = array<i64: 256, 128>}, {pipeline_mode = #tpu.pipeline_mode<synchronous>, transform_indices = @transform_6, window_bounds = array<i64: 256, 1>}, {pipeline_mode = #tpu.pipeline_mode<synchronous>, transform_indices = @transform_7, window_bounds = array<i64: 128, 256>}, {pipeline_mode = #tpu.pipeline_mode<synchronous>, transform_indices = @transform_8, window_bounds = array<i64: 128, 1>}, {pipeline_mode = #tpu.pipeline_mode<synchronous>, transform_indices = @transform_9, window_bounds = array<i64: 128, 1>}, {pipeline_mode = #tpu.pipeline_mode<synchronous>, transform_indices = @transform_10, window_bounds = array<i64: 1, 1>}, {transform_indices = @transform_11, window_bounds = array<i64: 1, 128>}]} {
    %c0 = arith.constant 0 : index
    %c0_0 = arith.constant 0 : index
    %0 = vector.load %arg2[%c0, %c0_0] : memref<256x16xf32, #tpu.memory_space<vmem>>, vector<256x16xf32>
    %c0_1 = arith.constant 0 : index
    %c0_2 = arith.constant 0 : index
    %1 = vector.load %arg1[%c0_1, %c0_2] : memref<16x128xf32, #tpu.memory_space<vmem>>, vector<16x128xf32>
    %cst = arith.constant dense<0.000000e+00> : vector<256x128xf32>
    %2 = tpu.matmul %0, %1, %cst {dimension_numbers = #tpu.dot_dimension_numbers<[1], [0], [0], [1], [0, 0, 1, 1], [], []>} : vector<256x16xf32>, vector<16x128xf32>, vector<256x128xf32> -> vector<256x128xf32>
    %c0_3 = arith.constant 0 : index
    %c0_4 = arith.constant 0 : index
    %3 = vector.load %arg3[%c0_3, %c0_4] : memref<256x1xf32, #tpu.memory_space<vmem>>, vector<256x1xf32>
    %4 = vector.broadcast %3 : vector<256x1xf32> to vector<256x128xf32>
    %5 = arith.addf %2, %4 : vector<256x128xf32>
    %cst_5 = arith.constant 0.000000e+00 : f32
    %6 = vector.broadcast %cst_5 : f32 to vector<256x128xf32>
    %7 = arith.maximumf %5, %6 : vector<256x128xf32>
    %c0_6 = arith.constant 0 : index
    %c0_7 = arith.constant 0 : index
    %8 = vector.load %arg4[%c0_6, %c0_7] : memref<256x128xf32, #tpu.memory_space<vmem>>, vector<256x128xf32>
    %9 = vector.extract_strided_slice %7 {offsets = [0, 0], sizes = [128, 128], strides = [1, 1]} : vector<256x128xf32> to vector<128x128xf32>
    %cst_8 = arith.constant dense<0.000000e+00> : vector<256x128xf32>
    %10 = tpu.matmul %8, %9, %cst_8 {dimension_numbers = #tpu.dot_dimension_numbers<[1], [0], [0], [1], [0, 0, 1, 1], [], []>} : vector<256x128xf32>, vector<128x128xf32>, vector<256x128xf32> -> vector<256x128xf32>
    %c0_9 = arith.constant 0 : index
    %c0_10 = arith.constant 0 : index
    %11 = vector.load %arg5[%c0_9, %c0_10] : memref<256x1xf32, #tpu.memory_space<vmem>>, vector<256x1xf32>
    %12 = vector.broadcast %11 : vector<256x1xf32> to vector<256x128xf32>
    %13 = arith.addf %10, %12 : vector<256x128xf32>
    %cst_11 = arith.constant 0.000000e+00 : f32
    %14 = vector.broadcast %cst_11 : f32 to vector<256x128xf32>
    %15 = arith.maximumf %13, %14 : vector<256x128xf32>
    %c0_12 = arith.constant 0 : index
    %c0_13 = arith.constant 0 : index
    %16 = vector.load %arg6[%c0_12, %c0_13] : memref<256x128xf32, #tpu.memory_space<vmem>>, vector<256x128xf32>
    %17 = vector.extract_strided_slice %7 {offsets = [128, 0], sizes = [128, 128], strides = [1, 1]} : vector<256x128xf32> to vector<128x128xf32>
    %cst_14 = arith.constant dense<0.000000e+00> : vector<256x128xf32>
    %18 = tpu.matmul %16, %17, %cst_14 {dimension_numbers = #tpu.dot_dimension_numbers<[1], [0], [0], [1], [0, 0, 1, 1], [], []>} : vector<256x128xf32>, vector<128x128xf32>, vector<256x128xf32> -> vector<256x128xf32>
    %c0_15 = arith.constant 0 : index
    %c0_16 = arith.constant 0 : index
    %19 = vector.load %arg7[%c0_15, %c0_16] : memref<256x1xf32, #tpu.memory_space<vmem>>, vector<256x1xf32>
    %20 = vector.broadcast %19 : vector<256x1xf32> to vector<256x128xf32>
    %21 = arith.addf %18, %20 : vector<256x128xf32>
    %cst_17 = arith.constant 0.000000e+00 : f32
    %22 = vector.broadcast %cst_17 : f32 to vector<256x128xf32>
    %23 = arith.maximumf %21, %22 : vector<256x128xf32>
    %24 = arith.addf %15, %23 : vector<256x128xf32>
    %c0_18 = arith.constant 0 : index
    %c0_19 = arith.constant 0 : index
    %25 = vector.load %arg8[%c0_18, %c0_19] : memref<128x256xf32, #tpu.memory_space<vmem>>, vector<128x256xf32>
    %cst_20 = arith.constant dense<0.000000e+00> : vector<128x128xf32>
    %26 = tpu.matmul %25, %24, %cst_20 {dimension_numbers = #tpu.dot_dimension_numbers<[1], [0], [0], [1], [0, 0, 1, 1], [], []>} : vector<128x256xf32>, vector<256x128xf32>, vector<128x128xf32> -> vector<128x128xf32>
    %c0_21 = arith.constant 0 : index
    %c0_22 = arith.constant 0 : index
    %27 = vector.load %arg9[%c0_21, %c0_22] : memref<128x1xf32, #tpu.memory_space<vmem>>, vector<128x1xf32>
    %28 = vector.broadcast %27 : vector<128x1xf32> to vector<128x128xf32>
    %29 = arith.addf %26, %28 : vector<128x128xf32>
    %cst_23 = arith.constant 0.000000e+00 : f32
    %30 = vector.broadcast %cst_23 : f32 to vector<128x128xf32>
    %31 = arith.maximumf %29, %30 : vector<128x128xf32>
    %c0_24 = arith.constant 0 : index
    %c0_25 = arith.constant 0 : index
    %32 = vector.load %arg10[%c0_24, %c0_25] : memref<128x1xf32, #tpu.memory_space<vmem>>, vector<128x1xf32>
    %33 = vector.broadcast %32 : vector<128x1xf32> to vector<128x128xf32>
    %34 = arith.mulf %31, %33 : vector<128x128xf32>
    %cst_26 = arith.constant dense<0.000000e+00> : vector<128xf32>
    %35 = vector.multi_reduction <add>, %34, %cst_26 [0] : vector<128x128xf32> to vector<128xf32>
    %36 = vector.shape_cast %35 : vector<128xf32> to vector<1x128xf32>
    %c0_27 = arith.constant 0 : index
    %c0_28 = arith.constant 0 : index
    %37 = vector.load %arg11[%c0_27, %c0_28] : memref<1x1xf32, #tpu.memory_space<vmem>>, vector<1x1xf32>
    %38 = vector.broadcast %37 : vector<1x1xf32> to vector<1x128xf32>
    %39 = arith.addf %36, %38 : vector<1x128xf32>
    %c0_29 = arith.constant 0 : index
    %c0_30 = arith.constant 0 : index
    %40 = vector.load %arg12[%c0_29, %c0_30] : memref<1x128xf32, #tpu.memory_space<vmem>>, vector<1x128xf32>
    tpu.vector_store %arg12[%c0_29, %c0_30], %39 {strides = array<i32>} : memref<1x128xf32, #tpu.memory_space<vmem>>, vector<1x128xf32>,
    return
  }
  func.func @transform_0(%arg0: i32) -> (i32, i32) {
    %c0_i32 = arith.constant 0 : i32
    %c0_i32_0 = arith.constant 0 : i32
    return %c0_i32, %arg0 : i32, i32
  }
  func.func @transform_1(%arg0: i32) -> (i32, i32) {
    %c0_i32 = arith.constant 0 : i32
    %c0_i32_0 = arith.constant 0 : i32
    %c0_i32_1 = arith.constant 0 : i32
    return %c0_i32, %c0_i32_0 : i32, i32
  }
  func.func @transform_2(%arg0: i32) -> (i32, i32) {
    %c0_i32 = arith.constant 0 : i32
    %c0_i32_0 = arith.constant 0 : i32
    %c0_i32_1 = arith.constant 0 : i32
    return %c0_i32, %c0_i32_0 : i32, i32
  }
  func.func @transform_3(%arg0: i32) -> (i32, i32) {
    %c0_i32 = arith.constant 0 : i32
    %c0_i32_0 = arith.constant 0 : i32
    %c0_i32_1 = arith.constant 0 : i32
    return %c0_i32, %c0_i32_0 : i32, i32
  }
  func.func @transform_4(%arg0: i32) -> (i32, i32) {
    %c0_i32 = arith.constant 0 : i32
    %c0_i32_0 = arith.constant 0 : i32
    %c0_i32_1 = arith.constant 0 : i32
    return %c0_i32, %c0_i32_0 : i32, i32
  }
  func.func @transform_5(%arg0: i32) -> (i32, i32) {
    %c0_i32 = arith.constant 0 : i32
    %c0_i32_0 = arith.constant 0 : i32
    %c0_i32_1 = arith.constant 0 : i32
    return %c0_i32, %c0_i32_0 : i32, i32
  }
  func.func @transform_6(%arg0: i32) -> (i32, i32) {
    %c0_i32 = arith.constant 0 : i32
    %c0_i32_0 = arith.constant 0 : i32
    %c0_i32_1 = arith.constant 0 : i32
    return %c0_i32, %c0_i32_0 : i32, i32
  }
  func.func @transform_7(%arg0: i32) -> (i32, i32) {
    %c0_i32 = arith.constant 0 : i32
    %c0_i32_0 = arith.constant 0 : i32
    %c0_i32_1 = arith.constant 0 : i32
    return %c0_i32, %c0_i32_0 : i32, i32
  }
  func.func @transform_8(%arg0: i32) -> (i32, i32) {
    %c0_i32 = arith.constant 0 : i32
    %c0_i32_0 = arith.constant 0 : i32
    %c0_i32_1 = arith.constant 0 : i32
    return %c0_i32, %c0_i32_0 : i32, i32
  }
  func.func @transform_9(%arg0: i32) -> (i32, i32) {
    %c0_i32 = arith.constant 0 : i32
    %c0_i32_0 = arith.constant 0 : i32
    %c0_i32_1 = arith.constant 0 : i32
    return %c0_i32, %c0_i32_0 : i32, i32
  }
  func.func @transform_10(%arg0: i32) -> (i32, i32) {
    %c0_i32 = arith.constant 0 : i32
    %c0_i32_0 = arith.constant 0 : i32
    %c0_i32_1 = arith.constant 0 : i32
    return %c0_i32, %c0_i32_0 : i32, i32
  }
  func.func @transform_11(%arg0: i32) -> (i32, i32) {
    %c0_i32 = arith.constant 0 : i32
    %c0_i32_0 = arith.constant 0 : i32
    return %c0_i32, %arg0 : i32, i32
  }
}

</mosaic_0001>

<llo_original>
// kernel: qnet_forward.1
$region0: #{qnet_forward.1}
  #allocation0 [shape = 'u32[]', space=smem, size = 0x4, offset = 0x4, fixed_abs, tag = 'smem constant byte address 0x4 - core index']
  #allocation1 [shape = 'u32[72,128]{1,0:T(1,128)}', space=vmem, size = 0x9000, scoped, tag = 'internal scratch']
  #allocation2 [shape = 'f32[1,1]{1,0:T(1,128)S(1)}', space=vmem, size = 0x200, scoped, tag = 'scoped memory for qnet_forward.1']
  %s0 = inlined_call_operand.vmem [shape: f32[16,128], index: 0, kind: input, shape index: {}]
  %s1 = inlined_call_operand.vmem [shape: f32[256,16], index: 1, kind: input, shape index: {}]
  %s2 = inlined_call_operand.vmem [shape: f32[256,1], index: 2, kind: input, shape index: {}]
  %s3 = inlined_call_operand.vmem [shape: f32[256,128], index: 3, kind: input, shape index: {}]
  %s4 = inlined_call_operand.vmem [shape: f32[256,1], index: 4, kind: input, shape index: {}]
  %s5 = inlined_call_operand.vmem [shape: f32[256,128], index: 5, kind: input, shape index: {}]
  %s6 = inlined_call_operand.vmem [shape: f32[256,1], index: 6, kind: input, shape index: {}]
  %s7 = inlined_call_operand.vmem [shape: f32[128,256], index: 7, kind: input, shape index: {}]
  %s8 = inlined_call_operand.vmem [shape: f32[128,1], index: 8, kind: input, shape index: {}]
  %s9 = inlined_call_operand.vmem [shape: f32[128,1], index: 9, kind: input, shape index: {}]
  %s10 = inlined_call_operand.<no memory space> [shape: f32[1,1], index: 10, kind: input, shape index: {}]
  %s11 = inlined_call_operand.vmem [shape: f32[1,128], index: 11, kind: output, shape index: {}]
  %s12 = sld [smem:[#allocation0]]
  $region54: #{qnet_forward.1} parent=0
    _
  %s14 = ssub.s32 1, %s12
  %s15 = scalar_select 0, %s14, %s12
  %v16 = vstv %s10
  %17 = vst [vmem:[#allocation2] sm:$0x1] %v16
  // Predicated region
  $region2: #{qnet_forward.1} parent=0 // pred_check
    _
  $region3: #{qnet_forward.1} parent=0 // pred_check_branch
    %19 = sbr.rel (0) target = $region5
  $region4: #{qnet_forward.1} parent=0 // pred_region
    _
  $region5: #{qnet_forward.1} parent=0 // pred_fallthru
    _
  // Predicated region
  $region6: #{qnet_forward.1} parent=0 // pred_check
    _
  $region7: #{qnet_forward.1} parent=0 // pred_check_branch
    %21 = sbr.rel (0) target = $region9
  $region8: #{qnet_forward.1} parent=0 // pred_region
    _
  $region9: #{qnet_forward.1} parent=0 // pred_fallthru
    _
  // Predicated region
  $region10: #{qnet_forward.1} parent=0 // pred_check
    _
  $region11: #{qnet_forward.1} parent=0 // pred_check_branch
    %23 = sbr.rel (0) target = $region13
  $region12: #{qnet_forward.1} parent=0 // pred_region
    _
  $region13: #{qnet_forward.1} parent=0 // pred_fallthru
    _
  // Predicated region
  $region14: #{qnet_forward.1} parent=0 // pred_check
    _
  $region15: #{qnet_forward.1} parent=0 // pred_check_branch
    %25 = sbr.rel (0) target = $region17
  $region16: #{qnet_forward.1} parent=0 // pred_region
    _
  $region17: #{qnet_forward.1} parent=0 // pred_fallthru
    _
  // Predicated region
  $region18: #{qnet_forward.1} parent=0 // pred_check
    _
  $region19: #{qnet_forward.1} parent=0 // pred_check_branch
    %27 = sbr.rel (0) target = $region21
  $region20: #{qnet_forward.1} parent=0 // pred_region
    _
  $region21: #{qnet_forward.1} parent=0 // pred_fallthru
    _
  // Predicated region
  $region22: #{qnet_forward.1} parent=0 // pred_check
    _
  $region23: #{qnet_forward.1} parent=0 // pred_check_branch
    %29 = sbr.rel (0) target = $region25
  $region24: #{qnet_forward.1} parent=0 // pred_region
    _
  $region25: #{qnet_forward.1} parent=0 // pred_fallthru
    _
  // Predicated region
  $region26: #{qnet_forward.1} parent=0 // pred_check
    _
  $region27: #{qnet_forward.1} parent=0 // pred_check_branch
    %31 = sbr.rel (0) target = $region29
  $region28: #{qnet_forward.1} parent=0 // pred_region
    _
  $region29: #{qnet_forward.1} parent=0 // pred_fallthru
    _
  // Predicated region
  $region30: #{qnet_forward.1} parent=0 // pred_check
    _
  $region31: #{qnet_forward.1} parent=0 // pred_check_branch
    %33 = sbr.rel (0) target = $region33
  $region32: #{qnet_forward.1} parent=0 // pred_region
    _
  $region33: #{qnet_forward.1} parent=0 // pred_fallthru
    _
  // Predicated region
  $region34: #{qnet_forward.1} parent=0 // pred_check
    _
  $region35: #{qnet_forward.1} parent=0 // pred_check_branch
    %35 = sbr.rel (0) target = $region37
  $region36: #{qnet_forward.1} parent=0 // pred_region
    _
  $region37: #{qnet_forward.1} parent=0 // pred_fallthru
    _
  // Predicated region
  $region38: #{qnet_forward.1} parent=0 // pred_check
    _
  $region39: #{qnet_forward.1} parent=0 // pred_check_branch
    %37 = sbr.rel (0) target = $region41
  $region40: #{qnet_forward.1} parent=0 // pred_region
    _
  $region41: #{qnet_forward.1} parent=0 // pred_fallthru
    _
  // Predicated region
  $region42: #{qnet_forward.1} parent=0 // pred_check
    _
  $region43: #{qnet_forward.1} parent=0 // pred_check_branch
    %39 = sbr.rel (0) target = $region45
  $region44: #{qnet_forward.1} parent=0 // pred_region
    _
  $region45: #{qnet_forward.1} parent=0 // pred_fallthru
    _
  %v40 = vld [vmem:[%s1] sm:$0xff]
  %v41 = vld [vmem:[%s1 + $0x8] sm:$0xff]
  %v42 = vld [vmem:[%s1 + $0x10] sm:$0xff]
  %v43 = vld [vmem:[%s1 + $0x18] sm:$0xff]
  %v44 = vld [vmem:[%s1 + $0x20] sm:$0xff]
  %v45 = vld [vmem:[%s1 + $0x28] sm:$0xff]
  %v46 = vld [vmem:[%s1 + $0x30] sm:$0xff]
  %v47 = vld [vmem:[%s1 + $0x38] sm:$0xff]
  %v48 = vld [vmem:[%s1 + $0x40] sm:$0xff]
  %v49 = vld [vmem:[%s1 + $0x48] sm:$0xff]
  %v50 = vld [vmem:[%s1 + $0x50] sm:$0xff]
  %v51 = vld [vmem:[%s1 + $0x58] sm:$0xff]
  %v52 = vld [vmem:[%s1 + $0x60] sm:$0xff]
  %v53 = vld [vmem:[%s1 + $0x68] sm:$0xff]
  %v54 = vld [vmem:[%s1 + $0x70] sm:$0xff]
  %v55 = vld [vmem:[%s1 + $0x78] sm:$0xff]
  %v56 = vld [vmem:[%s1 + $0x80] sm:$0xff]
  %v57 = vld [vmem:[%s1 + $0x88] sm:$0xff]
  %v58 = vld [vmem:[%s1 + $0x90] sm:$0xff]
  %v59 = vld [vmem:[%s1 + $0x98] sm:$0xff]
  %v60 = vld [vmem:[%s1 + $0xa0] sm:$0xff]
  %v61 = vld [vmem:[%s1 + $0xa8] sm:$0xff]
  %v62 = vld [vmem:[%s1 + $0xb0] sm:$0xff]
  %v63 = vld [vmem:[%s1 + $0xb8] sm:$0xff]
  %v64 = vld [vmem:[%s1 + $0xc0] sm:$0xff]
  %v65 = vld [vmem:[%s1 + $0xc8] sm:$0xff]
  %v66 = vld [vmem:[%s1 + $0xd0] sm:$0xff]
  %v67 = vld [vmem:[%s1 + $0xd8] sm:$0xff]
  %v68 = vld [vmem:[%s1 + $0xe0] sm:$0xff]
  %v69 = vld [vmem:[%s1 + $0xe8] sm:$0xff]
  %v70 = vld [vmem:[%s1 + $0xf0] sm:$0xff]
  %v71 = vld [vmem:[%s1 + $0xf8] sm:$0xff]
  %v72 = vld [vmem:[%s0] sm:$0xff]
  %v73 = vld [vmem:[%s0 + $0x8] sm:$0xff]
  %v74 = vld [vmem:[%s2] sm:$0xff]
  %v75 = vld [vmem:[%s2 + $0x8] sm:$0xff]
  %v76 = vld [vmem:[%s2 + $0x10] sm:$0xff]
  %v77 = vld [vmem:[%s2 + $0x18] sm:$0xff]
  %v78 = vld [vmem:[%s2 + $0x20] sm:$0xff]
  %v79 = vld [vmem:[%s2 + $0x28] sm:$0xff]
  %v80 = vld [vmem:[%s2 + $0x30] sm:$0xff]
  %v81 = vld [vmem:[%s2 + $0x38] sm:$0xff]
  %v82 = vld [vmem:[%s2 + $0x40] sm:$0xff]
  %v83 = vld [vmem:[%s2 + $0x48] sm:$0xff]
  %v84 = vld [vmem:[%s2 + $0x50] sm:$0xff]
  %v85 = vld [vmem:[%s2 + $0x58] sm:$0xff]
  %v86 = vld [vmem:[%s2 + $0x60] sm:$0xff]
  %v87 = vld [vmem:[%s2 + $0x68] sm:$0xff]
  %v88 = vld [vmem:[%s2 + $0x70] sm:$0xff]
  %v89 = vld [vmem:[%s2 + $0x78] sm:$0xff]
  %v90 = vld [vmem:[%s2 + $0x80] sm:$0xff]
  %v91 = vld [vmem:[%s2 + $0x88] sm:$0xff]
  %v92 = vld [vmem:[%s2 + $0x90] sm:$0xff]
  %v93 = vld [vmem:[%s2 + $0x98] sm:$0xff]
  %v94 = vld [vmem:[%s2 + $0xa0] sm:$0xff]
  %v95 = vld [vmem:[%s2 + $0xa8] sm:$0xff]
  %v96 = vld [vmem:[%s2 + $0xb0] sm:$0xff]
  %v97 = vld [vmem:[%s2 + $0xb8] sm:$0xff]
  %v98 = vld [vmem:[%s2 + $0xc0] sm:$0xff]
  %v99 = vld [vmem:[%s2 + $0xc8] sm:$0xff]
  %v100 = vld [vmem:[%s2 + $0xd0] sm:$0xff]
  %v101 = vld [vmem:[%s2 + $0xd8] sm:$0xff]
  %v102 = vld [vmem:[%s2 + $0xe0] sm:$0xff]
  %v103 = vld [vmem:[%s2 + $0xe8] sm:$0xff]
  %v104 = vld [vmem:[%s2 + $0xf0] sm:$0xff]
  %v105 = vld [vmem:[%s2 + $0xf8] sm:$0xff]
  %107 = vset.pattern.permute.xlu0 0
  %108 = vperm.xlu0 %107, %v74
  %v109 = vpop.permute.xlu0 %108
  %112 = vset.pattern.permute.xlu0 0
  %113 = vperm.xlu0 %112, %v75
  %v114 = vpop.permute.xlu0 %113
  %117 = vset.pattern.permute.xlu0 0
  %118 = vperm.xlu0 %117, %v76
  %v119 = vpop.permute.xlu0 %118
  %122 = vset.pattern.permute.xlu0 0
  %123 = vperm.xlu0 %122, %v77
  %v124 = vpop.permute.xlu0 %123
  %127 = vset.pattern.permute.xlu0 0
  %128 = vperm.xlu0 %127, %v78
  %v129 = vpop.permute.xlu0 %128
  %132 = vset.pattern.permute.xlu0 0
  %133 = vperm.xlu0 %132, %v79
  %v134 = vpop.permute.xlu0 %133
  %137 = vset.pattern.permute.xlu0 0
  %138 = vperm.xlu0 %137, %v80
  %v139 = vpop.permute.xlu0 %138
  %142 = vset.pattern.permute.xlu0 0
  %143 = vperm.xlu0 %142, %v81
  %v144 = vpop.permute.xlu0 %143
  %147 = vset.pattern.permute.xlu0 0
  %148 = vperm.xlu0 %147, %v82
  %v149 = vpop.permute.xlu0 %148
  %152 = vset.pattern.permute.xlu0 0
  %153 = vperm.xlu0 %152, %v83
  %v154 = vpop.permute.xlu0 %153
  %157 = vset.pattern.permute.xlu0 0
  %158 = vperm.xlu0 %157, %v84
  %v159 = vpop.permute.xlu0 %158
  %162 = vset.pattern.permute.xlu0 0
  %163 = vperm.xlu0 %162, %v85
  %v164 = vpop.permute.xlu0 %163
  %167 = vset.pattern.permute.xlu0 0
  %168 = vperm.xlu0 %167, %v86
  %v169 = vpop.permute.xlu0 %168
  %172 = vset.pattern.permute.xlu0 0
  %173 = vperm.xlu0 %172, %v87
  %v174 = vpop.permute.xlu0 %173
  %177 = vset.pattern.permute.xlu0 0
  %178 = vperm.xlu0 %177, %v88
  %v179 = vpop.permute.xlu0 %178
  %182 = vset.pattern.permute.xlu0 0
  %183 = vperm.xlu0 %182, %v89
  %v184 = vpop.permute.xlu0 %183
  %187 = vset.pattern.permute.xlu0 0
  %188 = vperm.xlu0 %187, %v90
  %v189 = vpop.permute.xlu0 %188
  %192 = vset.pattern.permute.xlu0 0
  %193 = vperm.xlu0 %192, %v91
  %v194 = vpop.permute.xlu0 %193
  %197 = vset.pattern.permute.xlu0 0
  %198 = vperm.xlu0 %197, %v92
  %v199 = vpop.permute.xlu0 %198
  %202 = vset.pattern.permute.xlu0 0
  %203 = vperm.xlu0 %202, %v93
  %v204 = vpop.permute.xlu0 %203
  %207 = vset.pattern.permute.xlu0 0
  %208 = vperm.xlu0 %207, %v94
  %v209 = vpop.permute.xlu0 %208
  %212 = vset.pattern.permute.xlu0 0
  %213 = vperm.xlu0 %212, %v95
  %v214 = vpop.permute.xlu0 %213
  %217 = vset.pattern.permute.xlu0 0
  %218 = vperm.xlu0 %217, %v96
  %v219 = vpop.permute.xlu0 %218
  %222 = vset.pattern.permute.xlu0 0
  %223 = vperm.xlu0 %222, %v97
  %v224 = vpop.permute.xlu0 %223
  %227 = vset.pattern.permute.xlu0 0
  %228 = vperm.xlu0 %227, %v98
  %v229 = vpop.permute.xlu0 %228
  %232 = vset.pattern.permute.xlu0 0
  %233 = vperm.xlu0 %232, %v99
  %v234 = vpop.permute.xlu0 %233
  %237 = vset.pattern.permute.xlu0 0
  %238 = vperm.xlu0 %237, %v100
  %v239 = vpop.permute.xlu0 %238
  %242 = vset.pattern.permute.xlu0 0
  %243 = vperm.xlu0 %242, %v101
  %v244 = vpop.permute.xlu0 %243
  %247 = vset.pattern.permute.xlu0 0
  %248 = vperm.xlu0 %247, %v102
  %v249 = vpop.permute.xlu0 %248
  %252 = vset.pattern.permute.xlu0 0
  %253 = vperm.xlu0 %252, %v103
  %v254 = vpop.permute.xlu0 %253
  %257 = vset.pattern.permute.xlu0 0
  %258 = vperm.xlu0 %257, %v104
  %v259 = vpop.permute.xlu0 %258
  %262 = vset.pattern.permute.xlu0 0
  %263 = vperm.xlu0 %262, %v105
  %v264 = vpop.permute.xlu0 %263
  %vm266 = vcmask 130048
  %v268 = vsel %vm266, %v40, 0
  %v271 = vsel %vm266, %v41, 0
  %v274 = vsel %vm266, %v42, 0
  %v277 = vsel %vm266, %v43, 0
  %v280 = vsel %vm266, %v44, 0
  %v283 = vsel %vm266, %v45, 0
  %v286 = vsel %vm266, %v46, 0
  %v289 = vsel %vm266, %v47, 0
  %v292 = vsel %vm266, %v48, 0
  %v295 = vsel %vm266, %v49, 0
  %v298 = vsel %vm266, %v50, 0
  %v301 = vsel %vm266, %v51, 0
  %v304 = vsel %vm266, %v52, 0
  %v307 = vsel %vm266, %v53, 0
  %v310 = vsel %vm266, %v54, 0
  %v313 = vsel %vm266, %v55, 0
  %v316 = vsel %vm266, %v56, 0
  %v319 = vsel %vm266, %v57, 0
  %v322 = vsel %vm266, %v58, 0
  %v325 = vsel %vm266, %v59, 0
  %v328 = vsel %vm266, %v60, 0
  %v331 = vsel %vm266, %v61, 0
  %v334 = vsel %vm266, %v62, 0
  %v337 = vsel %vm266, %v63, 0
  %v340 = vsel %vm266, %v64, 0
  %v343 = vsel %vm266, %v65, 0
  %v346 = vsel %vm266, %v66, 0
  %v349 = vsel %vm266, %v67, 0
  %v352 = vsel %vm266, %v68, 0
  %v355 = vsel %vm266, %v69, 0
  %v358 = vsel %vm266, %v70, 0
  %v361 = vsel %vm266, %v71, 0
  %363 = vmatpush.msra.mxu0 0.0
  %364 = vmatpush.msra.mxu0 0.0
  %365 = vmatpush.msra.mxu0 0.0
  %366 = vmatpush.msra.mxu0 0.0
  %367 = vmatpush.msra.mxu0 0.0
  %368 = vmatpush.msra.mxu0 0.0
  %369 = vmatpush.msra.mxu0 0.0
  %370 = vmatpush.msra.mxu0 0.0
  %371 = vmatpush.msra.mxu0 0.0
  %372 = vmatpush.msra.mxu0 0.0
  %373 = vmatpush.msra.mxu0 0.0
  %374 = vmatpush.msra.mxu0 0.0
  %375 = vmatpush.msra.mxu0 0.0
  %376 = vmatpush.msra.mxu0 0.0
  %377 = vmatpush.msra.mxu0 %v73
  %378 = vmatpush.msra.mxu0 %v72
  %379 = vmatmul.f32.gmra.mxu0 %v268
  %v380 = vpop.f32.mrf.mxu0
  %v381 = vadd.f32 %v109, %v380
  %382 = vmatmul.f32.gmra.mxu0 %v271
  %v383 = vpop.f32.mrf.mxu0
  %v384 = vadd.f32 %v114, %v383
  %385 = vmatmul.f32.gmra.mxu0 %v274
  %v386 = vpop.f32.mrf.mxu0
  %v387 = vadd.f32 %v119, %v386
  %388 = vmatmul.f32.gmra.mxu0 %v277
  %v389 = vpop.f32.mrf.mxu0
  %v390 = vadd.f32 %v124, %v389
  %391 = vmatmul.f32.gmra.mxu0 %v280
  %v392 = vpop.f32.mrf.mxu0
  %v393 = vadd.f32 %v129, %v392
  %394 = vmatmul.f32.gmra.mxu0 %v283
  %v395 = vpop.f32.mrf.mxu0
  %v396 = vadd.f32 %v134, %v395
  %397 = vmatmul.f32.gmra.mxu0 %v286
  %v398 = vpop.f32.mrf.mxu0
  %v399 = vadd.f32 %v139, %v398
  %400 = vmatmul.f32.gmra.mxu0 %v289
  %v401 = vpop.f32.mrf.mxu0
  %v402 = vadd.f32 %v144, %v401
  %403 = vmatmul.f32.gmra.mxu0 %v292
  %v404 = vpop.f32.mrf.mxu0
  %v405 = vadd.f32 %v149, %v404
  %406 = vmatmul.f32.gmra.mxu0 %v295
  %v407 = vpop.f32.mrf.mxu0
  %v408 = vadd.f32 %v154, %v407
  %409 = vmatmul.f32.gmra.mxu0 %v298
  %v410 = vpop.f32.mrf.mxu0
  %v411 = vadd.f32 %v159, %v410
  %412 = vmatmul.f32.gmra.mxu0 %v301
  %v413 = vpop.f32.mrf.mxu0
  %v414 = vadd.f32 %v164, %v413
  %415 = vmatmul.f32.gmra.mxu0 %v304
  %v416 = vpop.f32.mrf.mxu0
  %v417 = vadd.f32 %v169, %v416
  %418 = vmatmul.f32.gmra.mxu0 %v307
  %v419 = vpop.f32.mrf.mxu0
  %v420 = vadd.f32 %v174, %v419
  %421 = vmatmul.f32.gmra.mxu0 %v310
  %v422 = vpop.f32.mrf.mxu0
  %v423 = vadd.f32 %v179, %v422
  %424 = vmatmul.f32.gmra.mxu0 %v313
  %v425 = vpop.f32.mrf.mxu0
  %v426 = vadd.f32 %v184, %v425
  %427 = vmatmul.f32.gmra.mxu0 %v316
  %v428 = vpop.f32.mrf.mxu0
  %v429 = vadd.f32 %v189, %v428
  %430 = vmatmul.f32.gmra.mxu0 %v319
  %v431 = vpop.f32.mrf.mxu0
  %v432 = vadd.f32 %v194, %v431
  %433 = vmatmul.f32.gmra.mxu0 %v322
  %v434 = vpop.f32.mrf.mxu0
  %v435 = vadd.f32 %v199, %v434
  %436 = vmatmul.f32.gmra.mxu0 %v325
  %v437 = vpop.f32.mrf.mxu0
  %v438 = vadd.f32 %v204, %v437
  %439 = vmatmul.f32.gmra.mxu0 %v328
  %v440 = vpop.f32.mrf.mxu0
  %v441 = vadd.f32 %v209, %v440
  %442 = vmatmul.f32.gmra.mxu0 %v331
  %v443 = vpop.f32.mrf.mxu0
  %v444 = vadd.f32 %v214, %v443
  %445 = vmatmul.f32.gmra.mxu0 %v334
  %v446 = vpop.f32.mrf.mxu0
  %v447 = vadd.f32 %v219, %v446
  %448 = vmatmul.f32.gmra.mxu0 %v337
  %v449 = vpop.f32.mrf.mxu0
  %v450 = vadd.f32 %v224, %v449
  %451 = vmatmul.f32.gmra.mxu0 %v340
  %v452 = vpop.f32.mrf.mxu0
  %v453 = vadd.f32 %v229, %v452
  %454 = vmatmul.f32.gmra.mxu0 %v343
  %v455 = vpop.f32.mrf.mxu0
  %v456 = vadd.f32 %v234, %v455
  %457 = vmatmul.f32.gmra.mxu0 %v346
  %v458 = vpop.f32.mrf.mxu0
  %v459 = vadd.f32 %v239, %v458
  %460 = vmatmul.f32.gmra.mxu0 %v349
  %v461 = vpop.f32.mrf.mxu0
  %v462 = vadd.f32 %v244, %v461
  %463 = vmatmul.f32.gmra.mxu0 %v352
  %v464 = vpop.f32.mrf.mxu0
  %v465 = vadd.f32 %v249, %v464
  %466 = vmatmul.f32.gmra.mxu0 %v355
  %v467 = vpop.f32.mrf.mxu0
  %v468 = vadd.f32 %v254, %v467
  %469 = vmatmul.f32.gmra.mxu0 %v358
  %v470 = vpop.f32.mrf.mxu0
  %v471 = vadd.f32 %v259, %v470
  %472 = vmatmul.f32.gmra.mxu0 %v361
  %v473 = vpop.f32.mrf.mxu0
  %v474 = vadd.f32 %v264, %v473
  %475 = vdwg.mxu0
  %v476 = vmax.f32 %v381, 0.0
  %v477 = vmax.f32 %v384, 0.0
  %v478 = vmax.f32 %v387, 0.0
  %v479 = vmax.f32 %v390, 0.0
  %v480 = vmax.f32 %v393, 0.0
  %v481 = vmax.f32 %v396, 0.0
  %v482 = vmax.f32 %v399, 0.0
  %v483 = vmax.f32 %v402, 0.0
  %v484 = vmax.f32 %v405, 0.0
  %v485 = vmax.f32 %v408, 0.0
  %v486 = vmax.f32 %v411, 0.0
  %v487 = vmax.f32 %v414, 0.0
  %v488 = vmax.f32 %v417, 0.0
  %v489 = vmax.f32 %v420, 0.0
  %v490 = vmax.f32 %v423, 0.0
  %v491 = vmax.f32 %v426, 0.0
  %v492 = vmax.f32 %v429, 0.0
  %v493 = vmax.f32 %v432, 0.0
  %v494 = vmax.f32 %v435, 0.0
  %v495 = vmax.f32 %v438, 0.0
  %v496 = vmax.f32 %v441, 0.0
  %v497 = vmax.f32 %v444, 0.0
  %v498 = vmax.f32 %v447, 0.0
  %v499 = vmax.f32 %v450, 0.0
  %v500 = vmax.f32 %v453, 0.0
  %v501 = vmax.f32 %v456, 0.0
  %v502 = vmax.f32 %v459, 0.0
  %v503 = vmax.f32 %v462, 0.0
  %v504 = vmax.f32 %v465, 0.0
  %v505 = vmax.f32 %v468, 0.0
  %v506 = vmax.f32 %v471, 0.0
  %v507 = vmax.f32 %v474, 0.0
  %v508 = vld [vmem:[%s3] sm:$0xff]
  %v509 = vld [vmem:[%s3 + $0x8] sm:$0xff]
  %v510 = vld [vmem:[%s3 + $0x10] sm:$0xff]
  %v511 = vld [vmem:[%s3 + $0x18] sm:$0xff]
  %v512 = vld [vmem:[%s3 + $0x20] sm:$0xff]
  %v513 = vld [vmem:[%s3 + $0x28] sm:$0xff]
  %v514 = vld [vmem:[%s3 + $0x30] sm:$0xff]
  %v515 = vld [vmem:[%s3 + $0x38] sm:$0xff]
  %v516 = vld [vmem:[%s3 + $0x40] sm:$0xff]
  %v517 = vld [vmem:[%s3 + $0x48] sm:$0xff]
  %v518 = vld [vmem:[%s3 + $0x50] sm:$0xff]
  %v519 = vld [vmem:[%s3 + $0x58] sm:$0xff]
  %v520 = vld [vmem:[%s3 + $0x60] sm:$0xff]
  %v521 = vld [vmem:[%s3 + $0x68] sm:$0xff]
  %v522 = vld [vmem:[%s3 + $0x70] sm:$0xff]
  %v523 = vld [vmem:[%s3 + $0x78] sm:$0xff]
  %v524 = vld [vmem:[%s3 + $0x80] sm:$0xff]
  %v525 = vld [vmem:[%s3 + $0x88] sm:$0xff]
  %v526 = vld [vmem:[%s3 + $0x90] sm:$0xff]
  %v527 = vld [vmem:[%s3 + $0x98] sm:$0xff]
  %v528 = vld [vmem:[%s3 + $0xa0] sm:$0xff]
  %v529 = vld [vmem:[%s3 + $0xa8] sm:$0xff]
  %v530 = vld [vmem:[%s3 + $0xb0] sm:$0xff]
  %v531 = vld [vmem:[%s3 + $0xb8] sm:$0xff]
  %v532 = vld [vmem:[%s3 + $0xc0] sm:$0xff]
  %v533 = vld [vmem:[%s3 + $0xc8] sm:$0xff]
  %v534 = vld [vmem:[%s3 + $0xd0] sm:$0xff]
  %v535 = vld [vmem:[%s3 + $0xd8] sm:$0xff]
  %v536 = vld [vmem:[%s3 + $0xe0] sm:$0xff]
  %v537 = vld [vmem:[%s3 + $0xe8] sm:$0xff]
  %v538 = vld [vmem:[%s3 + $0xf0] sm:$0xff]
  %v539 = vld [vmem:[%s3 + $0xf8] sm:$0xff]
  %v540 = vld [vmem:[%s4] sm:$0xff]
  %v541 = vld [vmem:[%s4 + $0x8] sm:$0xff]
  %v542 = vld [vmem:[%s4 + $0x10] sm:$0xff]
  %v543 = vld [vmem:[%s4 + $0x18] sm:$0xff]
  %v544 = vld [vmem:[%s4 + $0x20] sm:$0xff]
  %v545 = vld [vmem:[%s4 + $0x28] sm:$0xff]
  %v546 = vld [vmem:[%s4 + $0x30] sm:$0xff]
  %v547 = vld [vmem:[%s4 + $0x38] sm:$0xff]
  %v548 = vld [vmem:[%s4 + $0x40] sm:$0xff]
  %v549 = vld [vmem:[%s4 + $0x48] sm:$0xff]
  %v550 = vld [vmem:[%s4 + $0x50] sm:$0xff]
  %v551 = vld [vmem:[%s4 + $0x58] sm:$0xff]
  %v552 = vld [vmem:[%s4 + $0x60] sm:$0xff]
  %v553 = vld [vmem:[%s4 + $0x68] sm:$0xff]
  %v554 = vld [vmem:[%s4 + $0x70] sm:$0xff]
  %v555 = vld [vmem:[%s4 + $0x78] sm:$0xff]
  %v556 = vld [vmem:[%s4 + $0x80] sm:$0xff]
  %v557 = vld [vmem:[%s4 + $0x88] sm:$0xff]
  %v558 = vld [vmem:[%s4 + $0x90] sm:$0xff]
  %v559 = vld [vmem:[%s4 + $0x98] sm:$0xff]
  %v560 = vld [vmem:[%s4 + $0xa0] sm:$0xff]
  %v561 = vld [vmem:[%s4 + $0xa8] sm:$0xff]
  %v562 = vld [vmem:[%s4 + $0xb0] sm:$0xff]
  %v563 = vld [vmem:[%s4 + $0xb8] sm:$0xff]
  %v564 = vld [vmem:[%s4 + $0xc0] sm:$0xff]
  %v565 = vld [vmem:[%s4 + $0xc8] sm:$0xff]
  %v566 = vld [vmem:[%s4 + $0xd0] sm:$0xff]
  %v567 = vld [vmem:[%s4 + $0xd8] sm:$0xff]
  %v568 = vld [vmem:[%s4 + $0xe0] sm:$0xff]
  %v569 = vld [vmem:[%s4 + $0xe8] sm:$0xff]
  %v570 = vld [vmem:[%s4 + $0xf0] sm:$0xff]
  %v571 = vld [vmem:[%s4 + $0xf8] sm:$0xff]
  %573 = vset.pattern.permute.xlu0 0
  %574 = vperm.xlu0 %573, %v540
  %v575 = vpop.permute.xlu0 %574
  %578 = vset.pattern.permute.xlu0 0
  %579 = vperm.xlu0 %578, %v541
  %v580 = vpop.permute.xlu0 %579
  %583 = vset.pattern.permute.xlu0 0
  %584 = vperm.xlu0 %583, %v542
  %v585 = vpop.permute.xlu0 %584
  %588 = vset.pattern.permute.xlu0 0
  %589 = vperm.xlu0 %588, %v543
  %v590 = vpop.permute.xlu0 %589
  %593 = vset.pattern.permute.xlu0 0
  %594 = vperm.xlu0 %593, %v544
  %v595 = vpop.permute.xlu0 %594
  %598 = vset.pattern.permute.xlu0 0
  %599 = vperm.xlu0 %598, %v545
  %v600 = vpop.permute.xlu0 %599
  %603 = vset.pattern.permute.xlu0 0
  %604 = vperm.xlu0 %603, %v546
  %v605 = vpop.permute.xlu0 %604
  %608 = vset.pattern.permute.xlu0 0
  %609 = vperm.xlu0 %608, %v547
  %v610 = vpop.permute.xlu0 %609
  %613 = vset.pattern.permute.xlu0 0
  %614 = vperm.xlu0 %613, %v548
  %v615 = vpop.permute.xlu0 %614
  %618 = vset.pattern.permute.xlu0 0
  %619 = vperm.xlu0 %618, %v549
  %v620 = vpop.permute.xlu0 %619
  %623 = vset.pattern.permute.xlu0 0
  %624 = vperm.xlu0 %623, %v550
  %v625 = vpop.permute.xlu0 %624
  %628 = vset.pattern.permute.xlu0 0
  %629 = vperm.xlu0 %628, %v551
  %v630 = vpop.permute.xlu0 %629
  %633 = vset.pattern.permute.xlu0 0
  %634 = vperm.xlu0 %633, %v552
  %v635 = vpop.permute.xlu0 %634
  %638 = vset.pattern.permute.xlu0 0
  %639 = vperm.xlu0 %638, %v553
  %v640 = vpop.permute.xlu0 %639
  %643 = vset.pattern.permute.xlu0 0
  %644 = vperm.xlu0 %643, %v554
  %v645 = vpop.permute.xlu0 %644
  %648 = vset.pattern.permute.xlu0 0
  %649 = vperm.xlu0 %648, %v555
  %v650 = vpop.permute.xlu0 %649
  %653 = vset.pattern.permute.xlu0 0
  %654 = vperm.xlu0 %653, %v556
  %v655 = vpop.permute.xlu0 %654
  %658 = vset.pattern.permute.xlu0 0
  %659 = vperm.xlu0 %658, %v557
  %v660 = vpop.permute.xlu0 %659
  %663 = vset.pattern.permute.xlu0 0
  %664 = vperm.xlu0 %663, %v558
  %v665 = vpop.permute.xlu0 %664
  %668 = vset.pattern.permute.xlu0 0
  %669 = vperm.xlu0 %668, %v559
  %v670 = vpop.permute.xlu0 %669
  %673 = vset.pattern.permute.xlu0 0
  %674 = vperm.xlu0 %673, %v560
  %v675 = vpop.permute.xlu0 %674
  %678 = vset.pattern.permute.xlu0 0
  %679 = vperm.xlu0 %678, %v561
  %v680 = vpop.permute.xlu0 %679
  %683 = vset.pattern.permute.xlu0 0
  %684 = vperm.xlu0 %683, %v562
  %v685 = vpop.permute.xlu0 %684
  %688 = vset.pattern.permute.xlu0 0
  %689 = vperm.xlu0 %688, %v563
  %v690 = vpop.permute.xlu0 %689
  %693 = vset.pattern.permute.xlu0 0
  %694 = vperm.xlu0 %693, %v564
  %v695 = vpop.permute.xlu0 %694
  %698 = vset.pattern.permute.xlu0 0
  %699 = vperm.xlu0 %698, %v565
  %v700 = vpop.permute.xlu0 %699
  %703 = vset.pattern.permute.xlu0 0
  %704 = vperm.xlu0 %703, %v566
  %v705 = vpop.permute.xlu0 %704
  %708 = vset.pattern.permute.xlu0 0
  %709 = vperm.xlu0 %708, %v567
  %v710 = vpop.permute.xlu0 %709
  %713 = vset.pattern.permute.xlu0 0
  %714 = vperm.xlu0 %713, %v568
  %v715 = vpop.permute.xlu0 %714
  %718 = vset.pattern.permute.xlu0 0
  %719 = vperm.xlu0 %718, %v569
  %v720 = vpop.permute.xlu0 %719
  %723 = vset.pattern.permute.xlu0 0
  %724 = vperm.xlu0 %723, %v570
  %v725 = vpop.permute.xlu0 %724
  %728 = vset.pattern.permute.xlu0 0
  %729 = vperm.xlu0 %728, %v571
  %v730 = vpop.permute.xlu0 %729
  %732 = vmatpush.msra.mxu0 %v491
  %733 = vmatpush.msra.mxu0 %v490
  %734 = vmatpush.msra.mxu0 %v489
  %735 = vmatpush.msra.mxu0 %v488
  %736 = vmatpush.msra.mxu0 %v487
  %737 = vmatpush.msra.mxu0 %v486
  %738 = vmatpush.msra.mxu0 %v485
  %739 = vmatpush.msra.mxu0 %v484
  %740 = vmatpush.msra.mxu0 %v483
  %741 = vmatpush.msra.mxu0 %v482
  %742 = vmatpush.msra.mxu0 %v481
  %743 = vmatpush.msra.mxu0 %v480
  %744 = vmatpush.msra.mxu0 %v479
  %745 = vmatpush.msra.mxu0 %v478
  %746 = vmatpush.msra.mxu0 %v477
  %747 = vmatpush.msra.mxu0 %v476
  %748 = vmatmul.f32.gmra.mxu0 %v508
  %v749 = vpop.f32.mrf.mxu0
  %v750 = vadd.f32 %v575, %v749
  %751 = vmatmul.f32.gmra.mxu0 %v509
  %v752 = vpop.f32.mrf.mxu0
  %v753 = vadd.f32 %v580, %v752
  %754 = vmatmul.f32.gmra.mxu0 %v510
  %v755 = vpop.f32.mrf.mxu0
  %v756 = vadd.f32 %v585, %v755
  %757 = vmatmul.f32.gmra.mxu0 %v511
  %v758 = vpop.f32.mrf.mxu0
  %v759 = vadd.f32 %v590, %v758
  %760 = vmatmul.f32.gmra.mxu0 %v512
  %v761 = vpop.f32.mrf.mxu0
  %v762 = vadd.f32 %v595, %v761
  %763 = vmatmul.f32.gmra.mxu0 %v513
  %v764 = vpop.f32.mrf.mxu0
  %v765 = vadd.f32 %v600, %v764
  %766 = vmatmul.f32.gmra.mxu0 %v514
  %v767 = vpop.f32.mrf.mxu0
  %v768 = vadd.f32 %v605, %v767
  %769 = vmatmul.f32.gmra.mxu0 %v515
  %v770 = vpop.f32.mrf.mxu0
  %v771 = vadd.f32 %v610, %v770
  %772 = vmatmul.f32.gmra.mxu0 %v516
  %v773 = vpop.f32.mrf.mxu0
  %v774 = vadd.f32 %v615, %v773
  %775 = vmatmul.f32.gmra.mxu0 %v517
  %v776 = vpop.f32.mrf.mxu0
  %v777 = vadd.f32 %v620, %v776
  %778 = vmatmul.f32.gmra.mxu0 %v518
  %v779 = vpop.f32.mrf.mxu0
  %v780 = vadd.f32 %v625, %v779
  %781 = vmatmul.f32.gmra.mxu0 %v519
  %v782 = vpop.f32.mrf.mxu0
  %v783 = vadd.f32 %v630, %v782
  %784 = vmatmul.f32.gmra.mxu0 %v520
  %v785 = vpop.f32.mrf.mxu0
  %v786 = vadd.f32 %v635, %v785
  %787 = vmatmul.f32.gmra.mxu0 %v521
  %v788 = vpop.f32.mrf.mxu0
  %v789 = vadd.f32 %v640, %v788
  %790 = vmatmul.f32.gmra.mxu0 %v522
  %v791 = vpop.f32.mrf.mxu0
  %v792 = vadd.f32 %v645, %v791
  %793 = vmatmul.f32.gmra.mxu0 %v523
  %v794 = vpop.f32.mrf.mxu0
  %v795 = vadd.f32 %v650, %v794
  %796 = vmatmul.f32.gmra.mxu0 %v524
  %v797 = vpop.f32.mrf.mxu0
  %v798 = vadd.f32 %v655, %v797
  %799 = vmatmul.f32.gmra.mxu0 %v525
  %v800 = vpop.f32.mrf.mxu0
  %v801 = vadd.f32 %v660, %v800
  %802 = vmatmul.f32.gmra.mxu0 %v526
  %v803 = vpop.f32.mrf.mxu0
  %v804 = vadd.f32 %v665, %v803
  %805 = vmatmul.f32.gmra.mxu0 %v527
  %v806 = vpop.f32.mrf.mxu0
  %v807 = vadd.f32 %v670, %v806
  %808 = vmatmul.f32.gmra.mxu0 %v528
  %v809 = vpop.f32.mrf.mxu0
  %v810 = vadd.f32 %v675, %v809
  %811 = vmatmul.f32.gmra.mxu0 %v529
  %v812 = vpop.f32.mrf.mxu0
  %v813 = vadd.f32 %v680, %v812
  %814 = vmatmul.f32.gmra.mxu0 %v530
  %v815 = vpop.f32.mrf.mxu0
  %v816 = vadd.f32 %v685, %v815
  %817 = vmatmul.f32.gmra.mxu0 %v531
  %v818 = vpop.f32.mrf.mxu0
  %v819 = vadd.f32 %v690, %v818
  %820 = vmatmul.f32.gmra.mxu0 %v532
  %v821 = vpop.f32.mrf.mxu0
  %v822 = vadd.f32 %v695, %v821
  %823 = vmatmul.f32.gmra.mxu0 %v533
  %v824 = vpop.f32.mrf.mxu0
  %v825 = vadd.f32 %v700, %v824
  %826 = vmatmul.f32.gmra.mxu0 %v534
  %v827 = vpop.f32.mrf.mxu0
  %v828 = vadd.f32 %v705, %v827
  %829 = vmatmul.f32.gmra.mxu0 %v535
  %v830 = vpop.f32.mrf.mxu0
  %v831 = vadd.f32 %v710, %v830
  %832 = vmatmul.f32.gmra.mxu0 %v536
  %v833 = vpop.f32.mrf.mxu0
  %v834 = vadd.f32 %v715, %v833
  %835 = vmatmul.f32.gmra.mxu0 %v537
  %v836 = vpop.f32.mrf.mxu0
  %v837 = vadd.f32 %v720, %v836
  %838 = vmatmul.f32.gmra.mxu0 %v538
  %v839 = vpop.f32.mrf.mxu0
  %v840 = vadd.f32 %v725, %v839
  %841 = vmatmul.f32.gmra.mxu0 %v539
  %v842 = vpop.f32.mrf.mxu0
  %v843 = vadd.f32 %v730, %v842
  %844 = vdwg.mxu0
  %v845 = vmax.f32 %v750, 0.0
  %v846 = vmax.f32 %v753, 0.0
  %v847 = vmax.f32 %v756, 0.0
  %v848 = vmax.f32 %v759, 0.0
  %v849 = vmax.f32 %v762, 0.0
  %v850 = vmax.f32 %v765, 0.0
  %v851 = vmax.f32 %v768, 0.0
  %v852 = vmax.f32 %v771, 0.0
  %v853 = vmax.f32 %v774, 0.0
  %v854 = vmax.f32 %v777, 0.0
  %v855 = vmax.f32 %v780, 0.0
  %v856 = vmax.f32 %v783, 0.0
  %v857 = vmax.f32 %v786, 0.0
  %v858 = vmax.f32 %v789, 0.0
  %v859 = vmax.f32 %v792, 0.0
  %v860 = vmax.f32 %v795, 0.0
  %v861 = vmax.f32 %v798, 0.0
  %v862 = vmax.f32 %v801, 0.0
  %v863 = vmax.f32 %v804, 0.0
  %v864 = vmax.f32 %v807, 0.0
  %v865 = vmax.f32 %v810, 0.0
  %v866 = vmax.f32 %v813, 0.0
  %v867 = vmax.f32 %v816, 0.0
  %v868 = vmax.f32 %v819, 0.0
  %v869 = vmax.f32 %v822, 0.0
  %v870 = vmax.f32 %v825, 0.0
  %v871 = vmax.f32 %v828, 0.0
  %v872 = vmax.f32 %v831, 0.0
  %v873 = vmax.f32 %v834, 0.0
  %v874 = vmax.f32 %v837, 0.0
  %v875 = vmax.f32 %v840, 0.0
  %v876 = vmax.f32 %v843, 0.0
  %v877 = vld [vmem:[%s5] sm:$0xff]
  %v878 = vld [vmem:[%s5 + $0x8] sm:$0xff]
  %v879 = vld [vmem:[%s5 + $0x10] sm:$0xff]
  %v880 = vld [vmem:[%s5 + $0x18] sm:$0xff]
  %v881 = vld [vmem:[%s5 + $0x20] sm:$0xff]
  %v882 = vld [vmem:[%s5 + $0x28] sm:$0xff]
  %v883 = vld [vmem:[%s5 + $0x30] sm:$0xff]
  %v884 = vld [vmem:[%s5 + $0x38] sm:$0xff]
  %v885 = vld [vmem:[%s5 + $0x40] sm:$0xff]
  %v886 = vld [vmem:[%s5 + $0x48] sm:$0xff]
  %v887 = vld [vmem:[%s5 + $0x50] sm:$0xff]
  %v888 = vld [vmem:[%s5 + $0x58] sm:$0xff]
  %v889 = vld [vmem:[%s5 + $0x60] sm:$0xff]
  %v890 = vld [vmem:[%s5 + $0x68] sm:$0xff]
  %v891 = vld [vmem:[%s5 + $0x70] sm:$0xff]
  %v892 = vld [vmem:[%s5 + $0x78] sm:$0xff]
  %v893 = vld [vmem:[%s5 + $0x80] sm:$0xff]
  %v894 = vld [vmem:[%s5 + $0x88] sm:$0xff]
  %v895 = vld [vmem:[%s5 + $0x90] sm:$0xff]
  %v896 = vld [vmem:[%s5 + $0x98] sm:$0xff]
  %v897 = vld [vmem:[%s5 + $0xa0] sm:$0xff]
  %v898 = vld [vmem:[%s5 + $0xa8] sm:$0xff]
  %v899 = vld [vmem:[%s5 + $0xb0] sm:$0xff]
  %v900 = vld [vmem:[%s5 + $0xb8] sm:$0xff]
  %v901 = vld [vmem:[%s5 + $0xc0] sm:$0xff]
  %v902 = vld [vmem:[%s5 + $0xc8] sm:$0xff]
  %v903 = vld [vmem:[%s5 + $0xd0] sm:$0xff]
  %v904 = vld [vmem:[%s5 + $0xd8] sm:$0xff]
  %v905 = vld [vmem:[%s5 + $0xe0] sm:$0xff]
  %v906 = vld [vmem:[%s5 + $0xe8] sm:$0xff]
  %v907 = vld [vmem:[%s5 + $0xf0] sm:$0xff]
  %v908 = vld [vmem:[%s5 + $0xf8] sm:$0xff]
  %v909 = vld [vmem:[%s6] sm:$0xff]
  %v910 = vld [vmem:[%s6 + $0x8] sm:$0xff]
  %v911 = vld [vmem:[%s6 + $0x10] sm:$0xff]
  %v912 = vld [vmem:[%s6 + $0x18] sm:$0xff]
  %v913 = vld [vmem:[%s6 + $0x20] sm:$0xff]
  %v914 = vld [vmem:[%s6 + $0x28] sm:$0xff]
  %v915 = vld [vmem:[%s6 + $0x30] sm:$0xff]
  %v916 = vld [vmem:[%s6 + $0x38] sm:$0xff]
  %v917 = vld [vmem:[%s6 + $0x40] sm:$0xff]
  %v918 = vld [vmem:[%s6 + $0x48] sm:$0xff]
  %v919 = vld [vmem:[%s6 + $0x50] sm:$0xff]
  %v920 = vld [vmem:[%s6 + $0x58] sm:$0xff]
  %v921 = vld [vmem:[%s6 + $0x60] sm:$0xff]
  %v922 = vld [vmem:[%s6 + $0x68] sm:$0xff]
  %v923 = vld [vmem:[%s6 + $0x70] sm:$0xff]
  %v924 = vld [vmem:[%s6 + $0x78] sm:$0xff]
  %v925 = vld [vmem:[%s6 + $0x80] sm:$0xff]
  %v926 = vld [vmem:[%s6 + $0x88] sm:$0xff]
  %v927 = vld [vmem:[%s6 + $0x90] sm:$0xff]
  %v928 = vld [vmem:[%s6 + $0x98] sm:$0xff]
  %v929 = vld [vmem:[%s6 + $0xa0] sm:$0xff]
  %v930 = vld [vmem:[%s6 + $0xa8] sm:$0xff]
  %v931 = vld [vmem:[%s6 + $0xb0] sm:$0xff]
  %v932 = vld [vmem:[%s6 + $0xb8] sm:$0xff]
  %v933 = vld [vmem:[%s6 + $0xc0] sm:$0xff]
  %v934 = vld [vmem:[%s6 + $0xc8] sm:$0xff]
  %v935 = vld [vmem:[%s6 + $0xd0] sm:$0xff]
  %v936 = vld [vmem:[%s6 + $0xd8] sm:$0xff]
  %v937 = vld [vmem:[%s6 + $0xe0] sm:$0xff]
  %v938 = vld [vmem:[%s6 + $0xe8] sm:$0xff]
  %v939 = vld [vmem:[%s6 + $0xf0] sm:$0xff]
  %v940 = vld [vmem:[%s6 + $0xf8] sm:$0xff]
  %942 = vset.pattern.permute.xlu0 0
  %943 = vperm.xlu0 %942, %v909
  %v944 = vpop.permute.xlu0 %943
  %947 = vset.pattern.permute.xlu0 0
  %948 = vperm.xlu0 %947, %v910
  %v949 = vpop.permute.xlu0 %948
  %952 = vset.pattern.permute.xlu0 0
  %953 = vperm.xlu0 %952, %v911
  %v954 = vpop.permute.xlu0 %953
  %957 = vset.pattern.permute.xlu0 0
  %958 = vperm.xlu0 %957, %v912
  %v959 = vpop.permute.xlu0 %958
  %962 = vset.pattern.permute.xlu0 0
  %963 = vperm.xlu0 %962, %v913
  %v964 = vpop.permute.xlu0 %963
  %967 = vset.pattern.permute.xlu0 0
  %968 = vperm.xlu0 %967, %v914
  %v969 = vpop.permute.xlu0 %968
  %972 = vset.pattern.permute.xlu0 0
  %973 = vperm.xlu0 %972, %v915
  %v974 = vpop.permute.xlu0 %973
  %977 = vset.pattern.permute.xlu0 0
  %978 = vperm.xlu0 %977, %v916
  %v979 = vpop.permute.xlu0 %978
  %982 = vset.pattern.permute.xlu0 0
  %983 = vperm.xlu0 %982, %v917
  %v984 = vpop.permute.xlu0 %983
  %987 = vset.pattern.permute.xlu0 0
  %988 = vperm.xlu0 %987, %v918
  %v989 = vpop.permute.xlu0 %988
  %992 = vset.pattern.permute.xlu0 0
  %993 = vperm.xlu0 %992, %v919
  %v994 = vpop.permute.xlu0 %993
  %997 = vset.pattern.permute.xlu0 0
  %998 = vperm.xlu0 %997, %v920
  %v999 = vpop.permute.xlu0 %998
  %1002 = vset.pattern.permute.xlu0 0
  %1003 = vperm.xlu0 %1002, %v921
  %v1004 = vpop.permute.xlu0 %1003
  %1007 = vset.pattern.permute.xlu0 0
  %1008 = vperm.xlu0 %1007, %v922
  %v1009 = vpop.permute.xlu0 %1008
  %1012 = vset.pattern.permute.xlu0 0
  %1013 = vperm.xlu0 %1012, %v923
  %v1014 = vpop.permute.xlu0 %1013
  %1017 = vset.pattern.permute.xlu0 0
  %1018 = vperm.xlu0 %1017, %v924
  %v1019 = vpop.permute.xlu0 %1018
  %1022 = vset.pattern.permute.xlu0 0
  %1023 = vperm.xlu0 %1022, %v925
  %v1024 = vpop.permute.xlu0 %1023
  %1027 = vset.pattern.permute.xlu0 0
  %1028 = vperm.xlu0 %1027, %v926
  %v1029 = vpop.permute.xlu0 %1028
  %1032 = vset.pattern.permute.xlu0 0
  %1033 = vperm.xlu0 %1032, %v927
  %v1034 = vpop.permute.xlu0 %1033
  %1037 = vset.pattern.permute.xlu0 0
  %1038 = vperm.xlu0 %1037, %v928
  %v1039 = vpop.permute.xlu0 %1038
  %1042 = vset.pattern.permute.xlu0 0
  %1043 = vperm.xlu0 %1042, %v929
  %v1044 = vpop.permute.xlu0 %1043
  %1047 = vset.pattern.permute.xlu0 0
  %1048 = vperm.xlu0 %1047, %v930
  %v1049 = vpop.permute.xlu0 %1048
  %1052 = vset.pattern.permute.xlu0 0
  %1053 = vperm.xlu0 %1052, %v931
  %v1054 = vpop.permute.xlu0 %1053
  %1057 = vset.pattern.permute.xlu0 0
  %1058 = vperm.xlu0 %1057, %v932
  %v1059 = vpop.permute.xlu0 %1058
  %1062 = vset.pattern.permute.xlu0 0
  %1063 = vperm.xlu0 %1062, %v933
  %v1064 = vpop.permute.xlu0 %1063
  %1067 = vset.pattern.permute.xlu0 0
  %1068 = vperm.xlu0 %1067, %v934
  %v1069 = vpop.permute.xlu0 %1068
  %1072 = vset.pattern.permute.xlu0 0
  %1073 = vperm.xlu0 %1072, %v935
  %v1074 = vpop.permute.xlu0 %1073
  %1077 = vset.pattern.permute.xlu0 0
  %1078 = vperm.xlu0 %1077, %v936
  %v1079 = vpop.permute.xlu0 %1078
  %1082 = vset.pattern.permute.xlu0 0
  %1083 = vperm.xlu0 %1082, %v937
  %v1084 = vpop.permute.xlu0 %1083
  %1087 = vset.pattern.permute.xlu0 0
  %1088 = vperm.xlu0 %1087, %v938
  %v1089 = vpop.permute.xlu0 %1088
  %1092 = vset.pattern.permute.xlu0 0
  %1093 = vperm.xlu0 %1092, %v939
  %v1094 = vpop.permute.xlu0 %1093
  %1097 = vset.pattern.permute.xlu0 0
  %1098 = vperm.xlu0 %1097, %v940
  %v1099 = vpop.permute.xlu0 %1098
  %1101 = vmatpush.msra.mxu0 %v507
  %1102 = vmatpush.msra.mxu0 %v506
  %1103 = vmatpush.msra.mxu0 %v505
  %1104 = vmatpush.msra.mxu0 %v504
  %1105 = vmatpush.msra.mxu0 %v503
  %1106 = vmatpush.msra.mxu0 %v502
  %1107 = vmatpush.msra.mxu0 %v501
  %1108 = vmatpush.msra.mxu0 %v500
  %1109 = vmatpush.msra.mxu0 %v499
  %1110 = vmatpush.msra.mxu0 %v498
  %1111 = vmatpush.msra.mxu0 %v497
  %1112 = vmatpush.msra.mxu0 %v496
  %1113 = vmatpush.msra.mxu0 %v495
  %1114 = vmatpush.msra.mxu0 %v494
  %1115 = vmatpush.msra.mxu0 %v493
  %1116 = vmatpush.msra.mxu0 %v492
  %1117 = vmatmul.f32.gmra.mxu0 %v877
  %v1118 = vpop.f32.mrf.mxu0
  %v1119 = vadd.f32 %v944, %v1118
  %1120 = vmatmul.f32.gmra.mxu0 %v878
  %v1121 = vpop.f32.mrf.mxu0
  %v1122 = vadd.f32 %v949, %v1121
  %1123 = vmatmul.f32.gmra.mxu0 %v879
  %v1124 = vpop.f32.mrf.mxu0
  %v1125 = vadd.f32 %v954, %v1124
  %1126 = vmatmul.f32.gmra.mxu0 %v880
  %v1127 = vpop.f32.mrf.mxu0
  %v1128 = vadd.f32 %v959, %v1127
  %1129 = vmatmul.f32.gmra.mxu0 %v881
  %v1130 = vpop.f32.mrf.mxu0
  %v1131 = vadd.f32 %v964, %v1130
  %1132 = vmatmul.f32.gmra.mxu0 %v882
  %v1133 = vpop.f32.mrf.mxu0
  %v1134 = vadd.f32 %v969, %v1133
  %1135 = vmatmul.f32.gmra.mxu0 %v883
  %v1136 = vpop.f32.mrf.mxu0
  %v1137 = vadd.f32 %v974, %v1136
  %1138 = vmatmul.f32.gmra.mxu0 %v884
  %v1139 = vpop.f32.mrf.mxu0
  %v1140 = vadd.f32 %v979, %v1139
  %1141 = vmatmul.f32.gmra.mxu0 %v885
  %v1142 = vpop.f32.mrf.mxu0
  %v1143 = vadd.f32 %v984, %v1142
  %1144 = vmatmul.f32.gmra.mxu0 %v886
  %v1145 = vpop.f32.mrf.mxu0
  %v1146 = vadd.f32 %v989, %v1145
  %1147 = vmatmul.f32.gmra.mxu0 %v887
  %v1148 = vpop.f32.mrf.mxu0
  %v1149 = vadd.f32 %v994, %v1148
  %1150 = vmatmul.f32.gmra.mxu0 %v888
  %v1151 = vpop.f32.mrf.mxu0
  %v1152 = vadd.f32 %v999, %v1151
  %1153 = vmatmul.f32.gmra.mxu0 %v889
  %v1154 = vpop.f32.mrf.mxu0
  %v1155 = vadd.f32 %v1004, %v1154
  %1156 = vmatmul.f32.gmra.mxu0 %v890
  %v1157 = vpop.f32.mrf.mxu0
  %v1158 = vadd.f32 %v1009, %v1157
  %1159 = vmatmul.f32.gmra.mxu0 %v891
  %v1160 = vpop.f32.mrf.mxu0
  %v1161 = vadd.f32 %v1014, %v1160
  %1162 = vmatmul.f32.gmra.mxu0 %v892
  %v1163 = vpop.f32.mrf.mxu0
  %v1164 = vadd.f32 %v1019, %v1163
  %1165 = vmatmul.f32.gmra.mxu0 %v893
  %v1166 = vpop.f32.mrf.mxu0
  %v1167 = vadd.f32 %v1024, %v1166
  %1168 = vmatmul.f32.gmra.mxu0 %v894
  %v1169 = vpop.f32.mrf.mxu0
  %v1170 = vadd.f32 %v1029, %v1169
  %1171 = vmatmul.f32.gmra.mxu0 %v895
  %v1172 = vpop.f32.mrf.mxu0
  %v1173 = vadd.f32 %v1034, %v1172
  %1174 = vmatmul.f32.gmra.mxu0 %v896
  %v1175 = vpop.f32.mrf.mxu0
  %v1176 = vadd.f32 %v1039, %v1175
  %1177 = vmatmul.f32.gmra.mxu0 %v897
  %v1178 = vpop.f32.mrf.mxu0
  %v1179 = vadd.f32 %v1044, %v1178
  %1180 = vmatmul.f32.gmra.mxu0 %v898
  %v1181 = vpop.f32.mrf.mxu0
  %v1182 = vadd.f32 %v1049, %v1181
  %1183 = vmatmul.f32.gmra.mxu0 %v899
  %v1184 = vpop.f32.mrf.mxu0
  %v1185 = vadd.f32 %v1054, %v1184
  %1186 = vmatmul.f32.gmra.mxu0 %v900
  %v1187 = vpop.f32.mrf.mxu0
  %v1188 = vadd.f32 %v1059, %v1187
  %1189 = vmatmul.f32.gmra.mxu0 %v901
  %v1190 = vpop.f32.mrf.mxu0
  %v1191 = vadd.f32 %v1064, %v1190
  %1192 = vmatmul.f32.gmra.mxu0 %v902
  %v1193 = vpop.f32.mrf.mxu0
  %v1194 = vadd.f32 %v1069, %v1193
  %1195 = vmatmul.f32.gmra.mxu0 %v903
  %v1196 = vpop.f32.mrf.mxu0
  %v1197 = vadd.f32 %v1074, %v1196
  %1198 = vmatmul.f32.gmra.mxu0 %v904
  %v1199 = vpop.f32.mrf.mxu0
  %v1200 = vadd.f32 %v1079, %v1199
  %1201 = vmatmul.f32.gmra.mxu0 %v905
  %v1202 = vpop.f32.mrf.mxu0
  %v1203 = vadd.f32 %v1084, %v1202
  %1204 = vmatmul.f32.gmra.mxu0 %v906
  %v1205 = vpop.f32.mrf.mxu0
  %v1206 = vadd.f32 %v1089, %v1205
  %1207 = vmatmul.f32.gmra.mxu0 %v907
  %v1208 = vpop.f32.mrf.mxu0
  %v1209 = vadd.f32 %v1094, %v1208
  %1210 = vmatmul.f32.gmra.mxu0 %v908
  %v1211 = vpop.f32.mrf.mxu0
  %v1212 = vadd.f32 %v1099, %v1211
  %1213 = vdwg.mxu0
  %v1214 = vmax.f32 %v1119, 0.0
  %v1215 = vmax.f32 %v1122, 0.0
  %v1216 = vmax.f32 %v1125, 0.0
  %v1217 = vmax.f32 %v1128, 0.0
  %v1218 = vmax.f32 %v1131, 0.0
  %v1219 = vmax.f32 %v1134, 0.0
  %v1220 = vmax.f32 %v1137, 0.0
  %v1221 = vmax.f32 %v1140, 0.0
  %v1222 = vmax.f32 %v1143, 0.0
  %v1223 = vmax.f32 %v1146, 0.0
  %v1224 = vmax.f32 %v1149, 0.0
  %v1225 = vmax.f32 %v1152, 0.0
  %v1226 = vmax.f32 %v1155, 0.0
  %v1227 = vmax.f32 %v1158, 0.0
  %v1228 = vmax.f32 %v1161, 0.0
  %v1229 = vmax.f32 %v1164, 0.0
  %v1230 = vmax.f32 %v1167, 0.0
  %v1231 = vmax.f32 %v1170, 0.0
  %v1232 = vmax.f32 %v1173, 0.0
  %v1233 = vmax.f32 %v1176, 0.0
  %v1234 = vmax.f32 %v1179, 0.0
  %v1235 = vmax.f32 %v1182, 0.0
  %v1236 = vmax.f32 %v1185, 0.0
  %v1237 = vmax.f32 %v1188, 0.0
  %v1238 = vmax.f32 %v1191, 0.0
  %v1239 = vmax.f32 %v1194, 0.0
  %v1240 = vmax.f32 %v1197, 0.0
  %v1241 = vmax.f32 %v1200, 0.0
  %v1242 = vmax.f32 %v1203, 0.0
  %v1243 = vmax.f32 %v1206, 0.0
  %v1244 = vmax.f32 %v1209, 0.0
  %v1245 = vmax.f32 %v1212, 0.0
  %v1246 = vadd.f32 %v845, %v1214
  %v1247 = vadd.f32 %v846, %v1215
  %v1248 = vadd.f32 %v847, %v1216
  %v1249 = vadd.f32 %v848, %v1217
  %v1250 = vadd.f32 %v849, %v1218
  %v1251 = vadd.f32 %v850, %v1219
  %v1252 = vadd.f32 %v851, %v1220
  %v1253 = vadd.f32 %v852, %v1221
  %v1254 = vadd.f32 %v853, %v1222
  %v1255 = vadd.f32 %v854, %v1223
  %v1256 = vadd.f32 %v855, %v1224
  %v1257 = vadd.f32 %v856, %v1225
  %v1258 = vadd.f32 %v857, %v1226
  %v1259 = vadd.f32 %v858, %v1227
  %v1260 = vadd.f32 %v859, %v1228
  %v1261 = vadd.f32 %v860, %v1229
  %v1262 = vadd.f32 %v861, %v1230
  %v1263 = vadd.f32 %v862, %v1231
  %v1264 = vadd.f32 %v863, %v1232
  %v1265 = vadd.f32 %v864, %v1233
  %v1266 = vadd.f32 %v865, %v1234
  %v1267 = vadd.f32 %v866, %v1235
  %v1268 = vadd.f32 %v867, %v1236
  %v1269 = vadd.f32 %v868, %v1237
  %v1270 = vadd.f32 %v869, %v1238
  %v1271 = vadd.f32 %v870, %v1239
  %v1272 = vadd.f32 %v871, %v1240
  %v1273 = vadd.f32 %v872, %v1241
  %v1274 = vadd.f32 %v873, %v1242
  %v1275 = vadd.f32 %v874, %v1243
  %v1276 = vadd.f32 %v875, %v1244
  %v1277 = vadd.f32 %v876, %v1245
  %v1278 = vld [vmem:[%s7] sm:$0xff]
  %v1279 = vld [vmem:[%s7 + $0x8] sm:$0xff]
  %v1280 = vld [vmem:[%s7 + $0x10] sm:$0xff]
  %v1281 = vld [vmem:[%s7 + $0x18] sm:$0xff]
  %v1282 = vld [vmem:[%s7 + $0x20] sm:$0xff]
  %v1283 = vld [vmem:[%s7 + $0x28] sm:$0xff]
  %v1284 = vld [vmem:[%s7 + $0x30] sm:$0xff]
  %v1285 = vld [vmem:[%s7 + $0x38] sm:$0xff]
  %v1286 = vld [vmem:[%s7 + $0x40] sm:$0xff]
  %v1287 = vld [vmem:[%s7 + $0x48] sm:$0xff]
  %v1288 = vld [vmem:[%s7 + $0x50] sm:$0xff]
  %v1289 = vld [vmem:[%s7 + $0x58] sm:$0xff]
  %v1290 = vld [vmem:[%s7 + $0x60] sm:$0xff]
  %v1291 = vld [vmem:[%s7 + $0x68] sm:$0xff]
  %v1292 = vld [vmem:[%s7 + $0x70] sm:$0xff]
  %v1293 = vld [vmem:[%s7 + $0x78] sm:$0xff]
  %v1294 = vld [vmem:[%s7 + $0x80] sm:$0xff]
  %v1295 = vld [vmem:[%s7 + $0x88] sm:$0xff]
  %v1296 = vld [vmem:[%s7 + $0x90] sm:$0xff]
  %v1297 = vld [vmem:[%s7 + $0x98] sm:$0xff]
  %v1298 = vld [vmem:[%s7 + $0xa0] sm:$0xff]
  %v1299 = vld [vmem:[%s7 + $0xa8] sm:$0xff]
  %v1300 = vld [vmem:[%s7 + $0xb0] sm:$0xff]
  %v1301 = vld [vmem:[%s7 + $0xb8] sm:$0xff]
  %v1302 = vld [vmem:[%s7 + $0xc0] sm:$0xff]
  %v1303 = vld [vmem:[%s7 + $0xc8] sm:$0xff]
  %v1304 = vld [vmem:[%s7 + $0xd0] sm:$0xff]
  %v1305 = vld [vmem:[%s7 + $0xd8] sm:$0xff]
  %v1306 = vld [vmem:[%s7 + $0xe0] sm:$0xff]
  %v1307 = vld [vmem:[%s7 + $0xe8] sm:$0xff]
  %v1308 = vld [vmem:[%s7 + $0xf0] sm:$0xff]
  %v1309 = vld [vmem:[%s7 + $0xf8] sm:$0xff]
  %v1310 = vld [vmem:[%s8] sm:$0xff]
  %v1311 = vld [vmem:[%s8 + $0x8] sm:$0xff]
  %v1312 = vld [vmem:[%s8 + $0x10] sm:$0xff]
  %v1313 = vld [vmem:[%s8 + $0x18] sm:$0xff]
  %v1314 = vld [vmem:[%s8 + $0x20] sm:$0xff]
  %v1315 = vld [vmem:[%s8 + $0x28] sm:$0xff]
  %v1316 = vld [vmem:[%s8 + $0x30] sm:$0xff]
  %v1317 = vld [vmem:[%s8 + $0x38] sm:$0xff]
  %v1318 = vld [vmem:[%s8 + $0x40] sm:$0xff]
  %v1319 = vld [vmem:[%s8 + $0x48] sm:$0xff]
  %v1320 = vld [vmem:[%s8 + $0x50] sm:$0xff]
  %v1321 = vld [vmem:[%s8 + $0x58] sm:$0xff]
  %v1322 = vld [vmem:[%s8 + $0x60] sm:$0xff]
  %v1323 = vld [vmem:[%s8 + $0x68] sm:$0xff]
  %v1324 = vld [vmem:[%s8 + $0x70] sm:$0xff]
  %v1325 = vld [vmem:[%s8 + $0x78] sm:$0xff]
  %1327 = vset.pattern.permute.xlu0 0
  %1328 = vperm.xlu0 %1327, %v1310
  %v1329 = vpop.permute.xlu0 %1328
  %1332 = vset.pattern.permute.xlu0 0
  %1333 = vperm.xlu0 %1332, %v1311
  %v1334 = vpop.permute.xlu0 %1333
  %1337 = vset.pattern.permute.xlu0 0
  %1338 = vperm.xlu0 %1337, %v1312
  %v1339 = vpop.permute.xlu0 %1338
  %1342 = vset.pattern.permute.xlu0 0
  %1343 = vperm.xlu0 %1342, %v1313
  %v1344 = vpop.permute.xlu0 %1343
  %1347 = vset.pattern.permute.xlu0 0
  %1348 = vperm.xlu0 %1347, %v1314
  %v1349 = vpop.permute.xlu0 %1348
  %1352 = vset.pattern.permute.xlu0 0
  %1353 = vperm.xlu0 %1352, %v1315
  %v1354 = vpop.permute.xlu0 %1353
  %1357 = vset.pattern.permute.xlu0 0
  %1358 = vperm.xlu0 %1357, %v1316
  %v1359 = vpop.permute.xlu0 %1358
  %1362 = vset.pattern.permute.xlu0 0
  %1363 = vperm.xlu0 %1362, %v1317
  %v1364 = vpop.permute.xlu0 %1363
  %1367 = vset.pattern.permute.xlu0 0
  %1368 = vperm.xlu0 %1367, %v1318
  %v1369 = vpop.permute.xlu0 %1368
  %1372 = vset.pattern.permute.xlu0 0
  %1373 = vperm.xlu0 %1372, %v1319
  %v1374 = vpop.permute.xlu0 %1373
  %1377 = vset.pattern.permute.xlu0 0
  %1378 = vperm.xlu0 %1377, %v1320
  %v1379 = vpop.permute.xlu0 %1378
  %1382 = vset.pattern.permute.xlu0 0
  %1383 = vperm.xlu0 %1382, %v1321
  %v1384 = vpop.permute.xlu0 %1383
  %1387 = vset.pattern.permute.xlu0 0
  %1388 = vperm.xlu0 %1387, %v1322
  %v1389 = vpop.permute.xlu0 %1388
  %1392 = vset.pattern.permute.xlu0 0
  %1393 = vperm.xlu0 %1392, %v1323
  %v1394 = vpop.permute.xlu0 %1393
  %1397 = vset.pattern.permute.xlu0 0
  %1398 = vperm.xlu0 %1397, %v1324
  %v1399 = vpop.permute.xlu0 %1398
  %1402 = vset.pattern.permute.xlu0 0
  %1403 = vperm.xlu0 %1402, %v1325
  %v1404 = vpop.permute.xlu0 %1403
  %1406 = vmatpush.msra.mxu0 %v1261
  %1407 = vmatpush.msra.mxu0 %v1260
  %1408 = vmatpush.msra.mxu0 %v1259
  %1409 = vmatpush.msra.mxu0 %v1258
  %1410 = vmatpush.msra.mxu0 %v1257
  %1411 = vmatpush.msra.mxu0 %v1256
  %1412 = vmatpush.msra.mxu0 %v1255
  %1413 = vmatpush.msra.mxu0 %v1254
  %1414 = vmatpush.msra.mxu0 %v1253
  %1415 = vmatpush.msra.mxu0 %v1252
  %1416 = vmatpush.msra.mxu0 %v1251
  %1417 = vmatpush.msra.mxu0 %v1250
  %1418 = vmatpush.msra.mxu0 %v1249
  %1419 = vmatpush.msra.mxu0 %v1248
  %1420 = vmatpush.msra.mxu0 %v1247
  %1421 = vmatpush.msra.mxu0 %v1246
  %1422 = vmatmul.f32.gmra.mxu0 %v1278
  %v1423 = vpop.f32.mrf.mxu0
  %v1424 = vadd.f32 %v1329, %v1423
  %1425 = vmatmul.f32.gmra.mxu0 %v1280
  %v1426 = vpop.f32.mrf.mxu0
  %v1427 = vadd.f32 %v1334, %v1426
  %1428 = vmatmul.f32.gmra.mxu0 %v1282
  %v1429 = vpop.f32.mrf.mxu0
  %v1430 = vadd.f32 %v1339, %v1429
  %1431 = vmatmul.f32.gmra.mxu0 %v1284
  %v1432 = vpop.f32.mrf.mxu0
  %v1433 = vadd.f32 %v1344, %v1432
  %1434 = vmatmul.f32.gmra.mxu0 %v1286
  %v1435 = vpop.f32.mrf.mxu0
  %v1436 = vadd.f32 %v1349, %v1435
  %1437 = vmatmul.f32.gmra.mxu0 %v1288
  %v1438 = vpop.f32.mrf.mxu0
  %v1439 = vadd.f32 %v1354, %v1438
  %1440 = vmatmul.f32.gmra.mxu0 %v1290
  %v1441 = vpop.f32.mrf.mxu0
  %v1442 = vadd.f32 %v1359, %v1441
  %1443 = vmatmul.f32.gmra.mxu0 %v1292
  %v1444 = vpop.f32.mrf.mxu0
  %v1445 = vadd.f32 %v1364, %v1444
  %1446 = vmatmul.f32.gmra.mxu0 %v1294
  %v1447 = vpop.f32.mrf.mxu0
  %v1448 = vadd.f32 %v1369, %v1447
  %1449 = vmatmul.f32.gmra.mxu0 %v1296
  %v1450 = vpop.f32.mrf.mxu0
  %v1451 = vadd.f32 %v1374, %v1450
  %1452 = vmatmul.f32.gmra.mxu0 %v1298
  %v1453 = vpop.f32.mrf.mxu0
  %v1454 = vadd.f32 %v1379, %v1453
  %1455 = vmatmul.f32.gmra.mxu0 %v1300
  %v1456 = vpop.f32.mrf.mxu0
  %v1457 = vadd.f32 %v1384, %v1456
  %1458 = vmatmul.f32.gmra.mxu0 %v1302
  %v1459 = vpop.f32.mrf.mxu0
  %v1460 = vadd.f32 %v1389, %v1459
  %1461 = vmatmul.f32.gmra.mxu0 %v1304
  %v1462 = vpop.f32.mrf.mxu0
  %v1463 = vadd.f32 %v1394, %v1462
  %1464 = vmatmul.f32.gmra.mxu0 %v1306
  %v1465 = vpop.f32.mrf.mxu0
  %v1466 = vadd.f32 %v1399, %v1465
  %1467 = vmatmul.f32.gmra.mxu0 %v1308
  %v1468 = vpop.f32.mrf.mxu0
  %v1469 = vadd.f32 %v1404, %v1468
  %1470 = vdwg.mxu0
  %1471 = vmatpush.msra.mxu0 %v1277
  %1472 = vmatpush.msra.mxu0 %v1276
  %1473 = vmatpush.msra.mxu0 %v1275
  %1474 = vmatpush.msra.mxu0 %v1274
  %1475 = vmatpush.msra.mxu0 %v1273
  %1476 = vmatpush.msra.mxu0 %v1272
  %1477 = vmatpush.msra.mxu0 %v1271
  %1478 = vmatpush.msra.mxu0 %v1270
  %1479 = vmatpush.msra.mxu0 %v1269
  %1480 = vmatpush.msra.mxu0 %v1268
  %1481 = vmatpush.msra.mxu0 %v1267
  %1482 = vmatpush.msra.mxu0 %v1266
  %1483 = vmatpush.msra.mxu0 %v1265
  %1484 = vmatpush.msra.mxu0 %v1264
  %1485 = vmatpush.msra.mxu0 %v1263
  %1486 = vmatpush.msra.mxu0 %v1262
  %1487 = vmatmul.f32.gmra.mxu0 %v1279
  %v1488 = vpop.f32.mrf.mxu0
  %v1489 = vadd.f32 %v1424, %v1488
  %1490 = vmatmul.f32.gmra.mxu0 %v1281
  %v1491 = vpop.f32.mrf.mxu0
  %v1492 = vadd.f32 %v1427, %v1491
  %1493 = vmatmul.f32.gmra.mxu0 %v1283
  %v1494 = vpop.f32.mrf.mxu0
  %v1495 = vadd.f32 %v1430, %v1494
  %1496 = vmatmul.f32.gmra.mxu0 %v1285
  %v1497 = vpop.f32.mrf.mxu0
  %v1498 = vadd.f32 %v1433, %v1497
  %1499 = vmatmul.f32.gmra.mxu0 %v1287
  %v1500 = vpop.f32.mrf.mxu0
  %v1501 = vadd.f32 %v1436, %v1500
  %1502 = vmatmul.f32.gmra.mxu0 %v1289
  %v1503 = vpop.f32.mrf.mxu0
  %v1504 = vadd.f32 %v1439, %v1503
  %1505 = vmatmul.f32.gmra.mxu0 %v1291
  %v1506 = vpop.f32.mrf.mxu0
  %v1507 = vadd.f32 %v1442, %v1506
  %1508 = vmatmul.f32.gmra.mxu0 %v1293
  %v1509 = vpop.f32.mrf.mxu0
  %v1510 = vadd.f32 %v1445, %v1509
  %1511 = vmatmul.f32.gmra.mxu0 %v1295
  %v1512 = vpop.f32.mrf.mxu0
  %v1513 = vadd.f32 %v1448, %v1512
  %1514 = vmatmul.f32.gmra.mxu0 %v1297
  %v1515 = vpop.f32.mrf.mxu0
  %v1516 = vadd.f32 %v1451, %v1515
  %1517 = vmatmul.f32.gmra.mxu0 %v1299
  %v1518 = vpop.f32.mrf.mxu0
  %v1519 = vadd.f32 %v1454, %v1518
  %1520 = vmatmul.f32.gmra.mxu0 %v1301
  %v1521 = vpop.f32.mrf.mxu0
  %v1522 = vadd.f32 %v1457, %v1521
  %1523 = vmatmul.f32.gmra.mxu0 %v1303
  %v1524 = vpop.f32.mrf.mxu0
  %v1525 = vadd.f32 %v1460, %v1524
  %1526 = vmatmul.f32.gmra.mxu0 %v1305
  %v1527 = vpop.f32.mrf.mxu0
  %v1528 = vadd.f32 %v1463, %v1527
  %1529 = vmatmul.f32.gmra.mxu0 %v1307
  %v1530 = vpop.f32.mrf.mxu0
  %v1531 = vadd.f32 %v1466, %v1530
  %1532 = vmatmul.f32.gmra.mxu0 %v1309
  %v1533 = vpop.f32.mrf.mxu0
  %v1534 = vadd.f32 %v1469, %v1533
  %1535 = vdwg.mxu0
  %v1536 = vmax.f32 %v1489, 0.0
  %v1537 = vmax.f32 %v1492, 0.0
  %v1538 = vmax.f32 %v1495, 0.0
  %v1539 = vmax.f32 %v1498, 0.0
  %v1540 = vmax.f32 %v1501, 0.0
  %v1541 = vmax.f32 %v1504, 0.0
  %v1542 = vmax.f32 %v1507, 0.0
  %v1543 = vmax.f32 %v1510, 0.0
  %v1544 = vmax.f32 %v1513, 0.0
  %v1545 = vmax.f32 %v1516, 0.0
  %v1546 = vmax.f32 %v1519, 0.0
  %v1547 = vmax.f32 %v1522, 0.0
  %v1548 = vmax.f32 %v1525, 0.0
  %v1549 = vmax.f32 %v1528, 0.0
  %v1550 = vmax.f32 %v1531, 0.0
  %v1551 = vmax.f32 %v1534, 0.0
  %v1552 = vld [vmem:[%s9] sm:$0xff]
  %v1553 = vld [vmem:[%s9 + $0x8] sm:$0xff]
  %v1554 = vld [vmem:[%s9 + $0x10] sm:$0xff]
  %v1555 = vld [vmem:[%s9 + $0x18] sm:$0xff]
  %v1556 = vld [vmem:[%s9 + $0x20] sm:$0xff]
  %v1557 = vld [vmem:[%s9 + $0x28] sm:$0xff]
  %v1558 = vld [vmem:[%s9 + $0x30] sm:$0xff]
  %v1559 = vld [vmem:[%s9 + $0x38] sm:$0xff]
  %v1560 = vld [vmem:[%s9 + $0x40] sm:$0xff]
  %v1561 = vld [vmem:[%s9 + $0x48] sm:$0xff]
  %v1562 = vld [vmem:[%s9 + $0x50] sm:$0xff]
  %v1563 = vld [vmem:[%s9 + $0x58] sm:$0xff]
  %v1564 = vld [vmem:[%s9 + $0x60] sm:$0xff]
  %v1565 = vld [vmem:[%s9 + $0x68] sm:$0xff]
  %v1566 = vld [vmem:[%s9 + $0x70] sm:$0xff]
  %v1567 = vld [vmem:[%s9 + $0x78] sm:$0xff]
  %1569 = vset.pattern.permute.xlu0 0
  %1570 = vperm.xlu0 %1569, %v1552
  %v1571 = vpop.permute.xlu0 %1570
  %1574 = vset.pattern.permute.xlu0 0
  %1575 = vperm.xlu0 %1574, %v1553
  %v1576 = vpop.permute.xlu0 %1575
  %1579 = vset.pattern.permute.xlu0 0
  %1580 = vperm.xlu0 %1579, %v1554
  %v1581 = vpop.permute.xlu0 %1580
  %1584 = vset.pattern.permute.xlu0 0
  %1585 = vperm.xlu0 %1584, %v1555
  %v1586 = vpop.permute.xlu0 %1585
  %1589 = vset.pattern.permute.xlu0 0
  %1590 = vperm.xlu0 %1589, %v1556
  %v1591 = vpop.permute.xlu0 %1590
  %1594 = vset.pattern.permute.xlu0 0
  %1595 = vperm.xlu0 %1594, %v1557
  %v1596 = vpop.permute.xlu0 %1595
  %1599 = vset.pattern.permute.xlu0 0
  %1600 = vperm.xlu0 %1599, %v1558
  %v1601 = vpop.permute.xlu0 %1600
  %1604 = vset.pattern.permute.xlu0 0
  %1605 = vperm.xlu0 %1604, %v1559
  %v1606 = vpop.permute.xlu0 %1605
  %1609 = vset.pattern.permute.xlu0 0
  %1610 = vperm.xlu0 %1609, %v1560
  %v1611 = vpop.permute.xlu0 %1610
  %1614 = vset.pattern.permute.xlu0 0
  %1615 = vperm.xlu0 %1614, %v1561
  %v1616 = vpop.permute.xlu0 %1615
  %1619 = vset.pattern.permute.xlu0 0
  %1620 = vperm.xlu0 %1619, %v1562
  %v1621 = vpop.permute.xlu0 %1620
  %1624 = vset.pattern.permute.xlu0 0
  %1625 = vperm.xlu0 %1624, %v1563
  %v1626 = vpop.permute.xlu0 %1625
  %1629 = vset.pattern.permute.xlu0 0
  %1630 = vperm.xlu0 %1629, %v1564
  %v1631 = vpop.permute.xlu0 %1630
  %1634 = vset.pattern.permute.xlu0 0
  %1635 = vperm.xlu0 %1634, %v1565
  %v1636 = vpop.permute.xlu0 %1635
  %1639 = vset.pattern.permute.xlu0 0
  %1640 = vperm.xlu0 %1639, %v1566
  %v1641 = vpop.permute.xlu0 %1640
  %1644 = vset.pattern.permute.xlu0 0
  %1645 = vperm.xlu0 %1644, %v1567
  %v1646 = vpop.permute.xlu0 %1645
  %v1648 = vmul.f32 %v1536, %v1571
  %v1649 = vmul.f32 %v1537, %v1576
  %v1650 = vmul.f32 %v1538, %v1581
  %v1651 = vmul.f32 %v1539, %v1586
  %v1652 = vmul.f32 %v1540, %v1591
  %v1653 = vmul.f32 %v1541, %v1596
  %v1654 = vmul.f32 %v1542, %v1601
  %v1655 = vmul.f32 %v1543, %v1606
  %v1656 = vmul.f32 %v1544, %v1611
  %v1657 = vmul.f32 %v1545, %v1616
  %v1658 = vmul.f32 %v1546, %v1621
  %v1659 = vmul.f32 %v1547, %v1626
  %v1660 = vmul.f32 %v1548, %v1631
  %v1661 = vmul.f32 %v1549, %v1636
  %v1662 = vmul.f32 %v1550, %v1641
  %v1663 = vmul.f32 %v1551, %v1646
  %v1664 = vadd.f32 %v1648, %v1649
  %v1665 = vadd.f32 %v1664, %v1650
  %v1666 = vadd.f32 %v1665, %v1651
  %v1667 = vadd.f32 %v1666, %v1652
  %v1668 = vadd.f32 %v1667, %v1653
  %v1669 = vadd.f32 %v1668, %v1654
  %v1670 = vadd.f32 %v1669, %v1655
  %v1671 = vadd.f32 %v1670, %v1656
  %v1672 = vadd.f32 %v1671, %v1657
  %v1673 = vadd.f32 %v1672, %v1658
  %v1674 = vadd.f32 %v1673, %v1659
  %v1675 = vadd.f32 %v1674, %v1660
  %v1676 = vadd.f32 %v1675, %v1661
  %v1677 = vadd.f32 %v1676, %v1662
  %v1678 = vadd.f32 %v1677, %v1663
  %v1679 = vrot.slane %v1678, 4
  %v1680 = vadd.f32 %v1678, %v1679
  %v1681 = vrot.slane %v1680, 2
  %v1682 = vadd.f32 %v1680, %v1681
  %v1683 = vrot.slane %v1682, 1
  %v1684 = vadd.f32 %v1682, %v1683
  %v1685 = vld [vmem:[#allocation2] sm:$0x1]
  %1687 = vset.pattern.permute.xlu0 0
  %1688 = vperm.xlu0 %1687, %v1685
  %v1689 = vpop.permute.xlu0 %1688
  %v1691 = vperm.slane %v1689, 0
  %v1692 = vadd.f32 %v1684, %v1691
  %1693 = vst [vmem:[%s11] sm:$0x1] %v1692
  // Predicated region
  $region46: #{qnet_forward.1} parent=0 // pred_check
    _
  $region47: #{qnet_forward.1} parent=0 // pred_check_branch
    %1695 = sbr.rel (0) target = $region49
  $region48: #{qnet_forward.1} parent=0 // pred_region
    _
  $region49: #{qnet_forward.1} parent=0 // pred_fallthru
    _
  // Predicated region
  $region50: #{qnet_forward.1} parent=0 // pred_check
    _
  $region51: #{qnet_forward.1} parent=0 // pred_check_branch
    %1697 = sbr.rel (0) target = $region53
  $region52: #{qnet_forward.1} parent=0 // pred_region
    _
  $region53: #{qnet_forward.1} parent=0 // pred_fallthru
    _

</llo_original>
